<compile_context>
chip_gen: v6e
topology: v6e:2x2x1
jax: 0.10.0
libtpu: 0.0.40
codegen_flags: <defaults>
</compile_context>

<pallas_src>
import functools
import math

import jax
import jax.numpy as jnp
from jax.experimental import pallas as pl
from jax.experimental.pallas import tpu as pltpu


def cadzow_up_kernel(mu_ref, gamma_ref,          # scalar-prefetch SMEM refs, shape (L,)
                     s_ref, a_ref, b_ref,        # VMEM inputs
                     tp_out_ref, sp_out_ref,     # VMEM outputs
                     *, num_layers, batch_tile, m, matmul_dtype):
    # s_ref: (N, TB*M)  folded batch tile (TB matrices side by side along lanes), f32
    # a_ref: (L, N, N)  per-layer left projections, already cast to matmul_dtype
    # b_ref: (L, M, M)  per-layer right projections, already cast to matmul_dtype
    t = s_ref[...].astype(jnp.float32)
    tp = t
    sp = t
    # TODO(synk): the static unroll keeps t/tp/sp/g/ag live as (N, TB*M) f32 values; at much
    # larger N/TB*M or num_layers switch to lax.fori_loop over layers + VMEM scratch for tp/sp
    # to bound live ranges (vreg spills contend with v5e's single vector-store slot).
    for l in range(num_layers):                  # static unroll; num_layers is small
        mu = mu_ref[l]
        gamma = gamma_ref[l]
        # data-consistency gradient step (VPU, f32 state)
        g = tp - mu * (tp - t)
        a_l = a_ref[l]                                            # (N, N)
        b_l = b_ref[l]                                            # (M, M)
        # left multiply: one MXU matmul over the whole folded tile
        ag = jnp.dot(a_l, g.astype(matmul_dtype),
                     preferred_element_type=jnp.float32)          # (N, TB*M) f32
        ag_m = ag.astype(matmul_dtype)
        # right multiply: TB dots against the SAME resident (M, M) B_l (no kron, no transposes).
        # (At larger TB this could become a single (N*TB, M)@(M, M) dot via an in-kernel reshape.)
        cols = [
            jnp.dot(ag_m[:, j * m:(j + 1) * m], b_l,
                    preferred_element_type=jnp.float32)           # (N, M) f32
            for j in range(batch_tile)
        ]
        sp_new = cols[0] if batch_tile == 1 else jnp.concatenate(cols, axis=1)
        # momentum / extrapolation step
        tp = sp_new + gamma * (sp_new - sp)
        sp = sp_new
    tp_out_ref[...] = tp.astype(tp_out_ref.dtype)
    sp_out_ref[...] = sp.astype(sp_out_ref.dtype)


@functools.partial(jax.jit, static_argnames=("batch_tile", "matmul_dtype"))
def unfolded_cadzow_up(S, A, B, mu, gamma, *, batch_tile=4, matmul_dtype=jnp.bfloat16):
    """Forward pass of UnfoldedCadzowUp. Returns the state tuple (T, Tp, Sp) in float32."""
    Bsz, N, M = S.shape
    L = A.shape[0]

    # Smallest lane-dense batch tile: TB*M is a multiple of 128 (unmasked vst stores) while
    # keeping the grid at several steps (>= 2 per TensorCore on v7x for DMA/compute overlap).
    q = 128 // math.gcd(M, 128)
    TB = q * max(1, batch_tile // q)
    Bp = ((Bsz + TB - 1) // TB) * TB             # zero-padded batch (sliced off below)
    TBM = TB * M

    # Fold the batch into the lane dimension: (Bp, N, M) -> (N, Bp*M).
    S_pad = jnp.pad(S.astype(jnp.float32), ((0, Bp - Bsz), (0, 0), (0, 0)))
    S_fold = jnp.transpose(S_pad, (1, 0, 2)).reshape(N, Bp * M)

    # Pre-cast weights to the MXU dtype once (bf16 halves weight DMA/VMEM; f32 accumulation kept).
    A_m = A.astype(matmul_dtype)
    B_m = B.astype(matmul_dtype)

    kernel = functools.partial(cadzow_up_kernel, num_layers=L, batch_tile=TB, m=M,
                               matmul_dtype=matmul_dtype)

    grid = (Bp // TB,)
    io_map = lambda i, mu_r, gm_r: (0, i)        # batch tile i -> lanes [i*TB*M, (i+1)*TB*M)
    w_map3 = lambda i, mu_r, gm_r: (0, 0, 0)     # weights: same full block every step (DMA'd once)

    grid_spec = pltpu.PrefetchScalarGridSpec(
        num_scalar_prefetch=2,                   # mu, gamma live in SMEM
        grid=grid,
        in_specs=[
            pl.BlockSpec((N, TBM), io_map),      # folded S (lane-dense, TB matrices per step)
            pl.BlockSpec((L, N, N), w_map3),     # A, all layers (tiny; no kron expansion)
            pl.BlockSpec((L, M, M), w_map3),     # B, all layers (tiny; no kron expansion)
        ],
        out_specs=[
            pl.BlockSpec((N, TBM), io_map),      # Tp (folded)
            pl.BlockSpec((N, TBM), io_map),      # Sp (folded)
        ],
    )
    out_shape = (
        jax.ShapeDtypeStruct((N, Bp * M), jnp.float32),
        jax.ShapeDtypeStruct((N, Bp * M), jnp.float32),
    )
    w_itemsize = jnp.dtype(matmul_dtype).itemsize
    cost = pl.CostEstimate(
        flops=2 * Bp * L * N * M * (N + M),
        transcendentals=0,
        bytes_accessed=3 * N * Bp * M * 4 + L * (N * N + M * M) * w_itemsize,
    )
    # Per-step VMEM ~= 2*4*N*TBM (S in, double-buffered) + 2*2*4*N*TBM (two f32 outs)
    #               + 2*L*(N^2 + M^2)*w_itemsize (weights) ~= 230 KiB here — far under the
    # scoped defaults (16/32/32 MiB on v5e/v6e/v7x).  Set vmem_limit_bytes when scaling N/M/TB/L.
    tp_fold, sp_fold = pl.pallas_call(
        kernel,
        out_shape=out_shape,
        grid_spec=grid_spec,
        compiler_params=pltpu.CompilerParams(dimension_semantics=("parallel",)),
        cost_estimate=cost,
    )(mu, gamma, S_fold, A_m, B_m)

    unfold = lambda x: jnp.transpose(x.reshape(N, Bp, M), (1, 0, 2))[:Bsz]
    # T is bit-identical to the (f32) input S; it is not written by the kernel (saves writeback).
    return S.astype(jnp.float32), unfold(tp_fold), unfold(sp_fold)


def unfolded_cadzow_up_ref(S, A, B, mu, gamma, matmul_dtype=jnp.float32):
    """Pure-JAX reference (same matmul input dtype, f32 accumulation and state)."""
    t = S.astype(jnp.float32)
    tp = t
    sp = t
    A_m = A.astype(matmul_dtype)
    B_m = B.astype(matmul_dtype)
    L = A.shape[0]
    for l in range(L):
        g = tp - mu[l] * (tp - t)
        ag = jnp.einsum('nk,bkm->bnm', A_m[l], g.astype(matmul_dtype),
                        preferred_element_type=jnp.float32)
        sp_new = jnp.einsum('bnk,km->bnm', ag.astype(matmul_dtype), B_m[l],
                            preferred_element_type=jnp.float32)
        tp = sp_new + gamma[l] * (sp_new - sp)
        sp = sp_new
    return t, tp, sp


if __name__ == "__main__":
    # Small, deterministic problem: prms = {'num_layers': 4}, batch=16, 32x32 Hankel-like matrices.
    num_layers = 4
    Bsz, N, M = 16, 32, 32

    key = jax.random.PRNGKey(0)
    k_s, k_a, k_b = jax.random.split(key, 3)

    S = jax.random.normal(k_s, (Bsz, N, M), dtype=jnp.float32)

    # Deterministic parameter init (near-identity projections, fixed step sizes).
    eyeN = jnp.eye(N, dtype=jnp.float32)
    eyeM = jnp.eye(M, dtype=jnp.float32)
    A = eyeN[None] + 0.02 * jax.random.normal(k_a, (num_layers, N, N), dtype=jnp.float32)
    B = eyeM[None] + 0.02 * jax.random.normal(k_b, (num_layers, M, M), dtype=jnp.float32)
    mu = jnp.linspace(0.3, 0.7, num_layers, dtype=jnp.float32)
    gamma = jnp.linspace(0.1, 0.4, num_layers, dtype=jnp.float32)

    # ---- f32 MXU path: strict check against the f32 reference. ----
    T32, Tp32, Sp32 = jax.block_until_ready(
        unfolded_cadzow_up(S, A, B, mu, gamma, matmul_dtype=jnp.float32)
    )
    T_ref, Tp_ref, Sp_ref = unfolded_cadzow_up_ref(S, A, B, mu, gamma, jnp.float32)
    assert jnp.allclose(T32, T_ref)
    assert jnp.allclose(Tp32, Tp_ref, rtol=1e-3, atol=1e-4)
    assert jnp.allclose(Sp32, Sp_ref, rtol=1e-3, atol=1e-4)

    # ---- bf16 MXU path (default; native fast path on v5e/v6e/v7x): matched-dtype reference. ----
    Tb, Tpb, Spb = jax.block_until_ready(unfolded_cadzow_up(S, A, B, mu, gamma))
    Tbr, Tpbr, Spbr = unfolded_cadzow_up_ref(S, A, B, mu, gamma, jnp.bfloat16)
    assert jnp.allclose(Tb, Tbr)
    assert jnp.allclose(Tpb, Tpbr, rtol=3e-2, atol=3e-2)
    assert jnp.allclose(Spb, Spbr, rtol=3e-2, atol=3e-2)

    print("KERNEL_OK")
</pallas_src>

<mosaic_0001>
module attributes {stable_mosaic.version = 11 : i64} {
  func.func @cadzow_up_kernel(%arg0: i32, %arg1: memref<4xf32, #tpu.memory_space<smem>>, %arg2: memref<4xf32, #tpu.memory_space<smem>>, %arg3: memref<32x128xf32, #tpu.memory_space<vmem>>, %arg4: memref<4x32x32xf32, #tpu.memory_space<vmem>>, %arg5: memref<4x32x32xf32, #tpu.memory_space<vmem>>, %arg6: memref<32x128xf32, #tpu.memory_space<vmem>>, %arg7: memref<32x128xf32, #tpu.memory_space<vmem>>) attributes {dimension_semantics = [#tpu.dimension_semantics<parallel>], iteration_bounds = array<i64: 4>, scalar_prefetch = 2 : i64, scratch_operands = 0 : i64, tpu.core_type = #tpu.core_type<tc>, window_params = [{transform_indices = @transform_0, window_bounds = array<i64: 32, 128>}, {pipeline_mode = #tpu.pipeline_mode<synchronous>, transform_indices = @transform_1, window_bounds = array<i64: 4, 32, 32>}, {pipeline_mode = #tpu.pipeline_mode<synchronous>, transform_indices = @transform_2, window_bounds = array<i64: 4, 32, 32>}, {transform_indices = @transform_3, window_bounds = array<i64: 32, 128>}, {transform_indices = @transform_4, window_bounds = array<i64: 32, 128>}]} {
    %c0 = arith.constant 0 : index
    %c0_0 = arith.constant 0 : index
    %0 = vector.load %arg3[%c0, %c0_0] : memref<32x128xf32, #tpu.memory_space<vmem>>, vector<32x128xf32>
    %c0_1 = arith.constant 0 : index
    %1 = memref.load %arg1[%c0_1] : memref<4xf32, #tpu.memory_space<smem>>
    %c0_2 = arith.constant 0 : index
    %2 = memref.load %arg2[%c0_2] : memref<4xf32, #tpu.memory_space<smem>>
    %3 = arith.subf %0, %0 : vector<32x128xf32>
    %4 = vector.broadcast %1 : f32 to vector<32x128xf32>
    %5 = arith.mulf %4, %3 : vector<32x128xf32>
    %6 = arith.subf %0, %5 : vector<32x128xf32>
    %c0_3 = arith.constant 0 : index
    %c0_4 = arith.constant 0 : index
    %c0_5 = arith.constant 0 : index
    %7 = vector.load %arg4[%c0_3, %c0_4, %c0_5] : memref<4x32x32xf32, #tpu.memory_space<vmem>>, vector<1x32x32xf32>
    %8 = vector.shape_cast %7 : vector<1x32x32xf32> to vector<32x32xf32>
    %c0_6 = arith.constant 0 : index
    %c0_7 = arith.constant 0 : index
    %c0_8 = arith.constant 0 : index
    %9 = vector.load %arg5[%c0_6, %c0_7, %c0_8] : memref<4x32x32xf32, #tpu.memory_space<vmem>>, vector<1x32x32xf32>
    %10 = vector.shape_cast %9 : vector<1x32x32xf32> to vector<32x32xf32>
    %cst = arith.constant dense<0.000000e+00> : vector<32x128xf32>
    %11 = tpu.matmul %8, %6, %cst {dimension_numbers = #tpu.dot_dimension_numbers<[1], [0], [0], [1], [0, 0, 1, 1], [], []>} : vector<32x32xf32>, vector<32x128xf32>, vector<32x128xf32> -> vector<32x128xf32>
    %12 = vector.extract_strided_slice %11 {offsets = [0, 0], sizes = [32, 32], strides = [1, 1]} : vector<32x128xf32> to vector<32x32xf32>
    %cst_9 = arith.constant dense<0.000000e+00> : vector<32x32xf32>
    %13 = tpu.matmul %12, %10, %cst_9 {dimension_numbers = #tpu.dot_dimension_numbers<[1], [0], [0], [1], [0, 0, 1, 1], [], []>} : vector<32x32xf32>, vector<32x32xf32>, vector<32x32xf32> -> vector<32x32xf32>
    %14 = vector.extract_strided_slice %11 {offsets = [0, 32], sizes = [32, 32], strides = [1, 1]} : vector<32x128xf32> to vector<32x32xf32>
    %cst_10 = arith.constant dense<0.000000e+00> : vector<32x32xf32>
    %15 = tpu.matmul %14, %10, %cst_10 {dimension_numbers = #tpu.dot_dimension_numbers<[1], [0], [0], [1], [0, 0, 1, 1], [], []>} : vector<32x32xf32>, vector<32x32xf32>, vector<32x32xf32> -> vector<32x32xf32>
    %16 = vector.extract_strided_slice %11 {offsets = [0, 64], sizes = [32, 32], strides = [1, 1]} : vector<32x128xf32> to vector<32x32xf32>
    %cst_11 = arith.constant dense<0.000000e+00> : vector<32x32xf32>
    %17 = tpu.matmul %16, %10, %cst_11 {dimension_numbers = #tpu.dot_dimension_numbers<[1], [0], [0], [1], [0, 0, 1, 1], [], []>} : vector<32x32xf32>, vector<32x32xf32>, vector<32x32xf32> -> vector<32x32xf32>
    %18 = vector.extract_strided_slice %11 {offsets = [0, 96], sizes = [32, 32], strides = [1, 1]} : vector<32x128xf32> to vector<32x32xf32>
    %cst_12 = arith.constant dense<0.000000e+00> : vector<32x32xf32>
    %19 = tpu.matmul %18, %10, %cst_12 {dimension_numbers = #tpu.dot_dimension_numbers<[1], [0], [0], [1], [0, 0, 1, 1], [], []>} : vector<32x32xf32>, vector<32x32xf32>, vector<32x32xf32> -> vector<32x32xf32>
    %20 = tpu.concatenate %13, %15, %17, %19 in 1 : vector<32x32xf32>, vector<32x32xf32>, vector<32x32xf32>, vector<32x32xf32> -> vector<32x128xf32>
    %21 = arith.subf %20, %0 : vector<32x128xf32>
    %22 = vector.broadcast %2 : f32 to vector<32x128xf32>
    %23 = arith.mulf %22, %21 : vector<32x128xf32>
    %24 = arith.addf %20, %23 : vector<32x128xf32>
    %c1 = arith.constant 1 : index
    %25 = memref.load %arg1[%c1] : memref<4xf32, #tpu.memory_space<smem>>
    %c1_13 = arith.constant 1 : index
    %26 = memref.load %arg2[%c1_13] : memref<4xf32, #tpu.memory_space<smem>>
    %27 = arith.subf %24, %0 : vector<32x128xf32>
    %28 = vector.broadcast %25 : f32 to vector<32x128xf32>
    %29 = arith.mulf %28, %27 : vector<32x128xf32>
    %30 = arith.subf %24, %29 : vector<32x128xf32>
    %c1_14 = arith.constant 1 : index
    %c0_15 = arith.constant 0 : index
    %c0_16 = arith.constant 0 : index
    %31 = vector.load %arg4[%c1_14, %c0_15, %c0_16] : memref<4x32x32xf32, #tpu.memory_space<vmem>>, vector<1x32x32xf32>
    %32 = vector.shape_cast %31 : vector<1x32x32xf32> to vector<32x32xf32>
    %c1_17 = arith.constant 1 : index
    %c0_18 = arith.constant 0 : index
    %c0_19 = arith.constant 0 : index
    %33 = vector.load %arg5[%c1_17, %c0_18, %c0_19] : memref<4x32x32xf32, #tpu.memory_space<vmem>>, vector<1x32x32xf32>
    %34 = vector.shape_cast %33 : vector<1x32x32xf32> to vector<32x32xf32>
    %cst_20 = arith.constant dense<0.000000e+00> : vector<32x128xf32>
    %35 = tpu.matmul %32, %30, %cst_20 {dimension_numbers = #tpu.dot_dimension_numbers<[1], [0], [0], [1], [0, 0, 1, 1], [], []>} : vector<32x32xf32>, vector<32x128xf32>, vector<32x128xf32> -> vector<32x128xf32>
    %36 = vector.extract_strided_slice %35 {offsets = [0, 0], sizes = [32, 32], strides = [1, 1]} : vector<32x128xf32> to vector<32x32xf32>
    %cst_21 = arith.constant dense<0.000000e+00> : vector<32x32xf32>
    %37 = tpu.matmul %36, %34, %cst_21 {dimension_numbers = #tpu.dot_dimension_numbers<[1], [0], [0], [1], [0, 0, 1, 1], [], []>} : vector<32x32xf32>, vector<32x32xf32>, vector<32x32xf32> -> vector<32x32xf32>
    %38 = vector.extract_strided_slice %35 {offsets = [0, 32], sizes = [32, 32], strides = [1, 1]} : vector<32x128xf32> to vector<32x32xf32>
    %cst_22 = arith.constant dense<0.000000e+00> : vector<32x32xf32>
    %39 = tpu.matmul %38, %34, %cst_22 {dimension_numbers = #tpu.dot_dimension_numbers<[1], [0], [0], [1], [0, 0, 1, 1], [], []>} : vector<32x32xf32>, vector<32x32xf32>, vector<32x32xf32> -> vector<32x32xf32>
    %40 = vector.extract_strided_slice %35 {offsets = [0, 64], sizes = [32, 32], strides = [1, 1]} : vector<32x128xf32> to vector<32x32xf32>
    %cst_23 = arith.constant dense<0.000000e+00> : vector<32x32xf32>
    %41 = tpu.matmul %40, %34, %cst_23 {dimension_numbers = #tpu.dot_dimension_numbers<[1], [0], [0], [1], [0, 0, 1, 1], [], []>} : vector<32x32xf32>, vector<32x32xf32>, vector<32x32xf32> -> vector<32x32xf32>
    %42 = vector.extract_strided_slice %35 {offsets = [0, 96], sizes = [32, 32], strides = [1, 1]} : vector<32x128xf32> to vector<32x32xf32>
    %cst_24 = arith.constant dense<0.000000e+00> : vector<32x32xf32>
    %43 = tpu.matmul %42, %34, %cst_24 {dimension_numbers = #tpu.dot_dimension_numbers<[1], [0], [0], [1], [0, 0, 1, 1], [], []>} : vector<32x32xf32>, vector<32x32xf32>, vector<32x32xf32> -> vector<32x32xf32>
    %44 = tpu.concatenate %37, %39, %41, %43 in 1 : vector<32x32xf32>, vector<32x32xf32>, vector<32x32xf32>, vector<32x32xf32> -> vector<32x128xf32>
    %45 = arith.subf %44, %20 : vector<32x128xf32>
    %46 = vector.broadcast %26 : f32 to vector<32x128xf32>
    %47 = arith.mulf %46, %45 : vector<32x128xf32>
    %48 = arith.addf %44, %47 : vector<32x128xf32>
    %c2 = arith.constant 2 : index
    %49 = memref.load %arg1[%c2] : memref<4xf32, #tpu.memory_space<smem>>
    %c2_25 = arith.constant 2 : index
    %50 = memref.load %arg2[%c2_25] : memref<4xf32, #tpu.memory_space<smem>>
    %51 = arith.subf %48, %0 : vector<32x128xf32>
    %52 = vector.broadcast %49 : f32 to vector<32x128xf32>
    %53 = arith.mulf %52, %51 : vector<32x128xf32>
    %54 = arith.subf %48, %53 : vector<32x128xf32>
    %c2_26 = arith.constant 2 : index
    %c0_27 = arith.constant 0 : index
    %c0_28 = arith.constant 0 : index
    %55 = vector.load %arg4[%c2_26, %c0_27, %c0_28] : memref<4x32x32xf32, #tpu.memory_space<vmem>>, vector<1x32x32xf32>
    %56 = vector.shape_cast %55 : vector<1x32x32xf32> to vector<32x32xf32>
    %c2_29 = arith.constant 2 : index
    %c0_30 = arith.constant 0 : index
    %c0_31 = arith.constant 0 : index
    %57 = vector.load %arg5[%c2_29, %c0_30, %c0_31] : memref<4x32x32xf32, #tpu.memory_space<vmem>>, vector<1x32x32xf32>
    %58 = vector.shape_cast %57 : vector<1x32x32xf32> to vector<32x32xf32>
    %cst_32 = arith.constant dense<0.000000e+00> : vector<32x128xf32>
    %59 = tpu.matmul %56, %54, %cst_32 {dimension_numbers = #tpu.dot_dimension_numbers<[1], [0], [0], [1], [0, 0, 1, 1], [], []>} : vector<32x32xf32>, vector<32x128xf32>, vector<32x128xf32> -> vector<32x128xf32>
    %60 = vector.extract_strided_slice %59 {offsets = [0, 0], sizes = [32, 32], strides = [1, 1]} : vector<32x128xf32> to vector<32x32xf32>
    %cst_33 = arith.constant dense<0.000000e+00> : vector<32x32xf32>
    %61 = tpu.matmul %60, %58, %cst_33 {dimension_numbers = #tpu.dot_dimension_numbers<[1], [0], [0], [1], [0, 0, 1, 1], [], []>} : vector<32x32xf32>, vector<32x32xf32>, vector<32x32xf32> -> vector<32x32xf32>
    %62 = vector.extract_strided_slice %59 {offsets = [0, 32], sizes = [32, 32], strides = [1, 1]} : vector<32x128xf32> to vector<32x32xf32>
    %cst_34 = arith.constant dense<0.000000e+00> : vector<32x32xf32>
    %63 = tpu.matmul %62, %58, %cst_34 {dimension_numbers = #tpu.dot_dimension_numbers<[1], [0], [0], [1], [0, 0, 1, 1], [], []>} : vector<32x32xf32>, vector<32x32xf32>, vector<32x32xf32> -> vector<32x32xf32>
    %64 = vector.extract_strided_slice %59 {offsets = [0, 64], sizes = [32, 32], strides = [1, 1]} : vector<32x128xf32> to vector<32x32xf32>
    %cst_35 = arith.constant dense<0.000000e+00> : vector<32x32xf32>
    %65 = tpu.matmul %64, %58, %cst_35 {dimension_numbers = #tpu.dot_dimension_numbers<[1], [0], [0], [1], [0, 0, 1, 1], [], []>} : vector<32x32xf32>, vector<32x32xf32>, vector<32x32xf32> -> vector<32x32xf32>
    %66 = vector.extract_strided_slice %59 {offsets = [0, 96], sizes = [32, 32], strides = [1, 1]} : vector<32x128xf32> to vector<32x32xf32>
    %cst_36 = arith.constant dense<0.000000e+00> : vector<32x32xf32>
    %67 = tpu.matmul %66, %58, %cst_36 {dimension_numbers = #tpu.dot_dimension_numbers<[1], [0], [0], [1], [0, 0, 1, 1], [], []>} : vector<32x32xf32>, vector<32x32xf32>, vector<32x32xf32> -> vector<32x32xf32>
    %68 = tpu.concatenate %61, %63, %65, %67 in 1 : vector<32x32xf32>, vector<32x32xf32>, vector<32x32xf32>, vector<32x32xf32> -> vector<32x128xf32>
    %69 = arith.subf %68, %44 : vector<32x128xf32>
    %70 = vector.broadcast %50 : f32 to vector<32x128xf32>
    %71 = arith.mulf %70, %69 : vector<32x128xf32>
    %72 = arith.addf %68, %71 : vector<32x128xf32>
    %c3 = arith.constant 3 : index
    %73 = memref.load %arg1[%c3] : memref<4xf32, #tpu.memory_space<smem>>
    %c3_37 = arith.constant 3 : index
    %74 = memref.load %arg2[%c3_37] : memref<4xf32, #tpu.memory_space<smem>>
    %75 = arith.subf %72, %0 : vector<32x128xf32>
    %76 = vector.broadcast %73 : f32 to vector<32x128xf32>
    %77 = arith.mulf %76, %75 : vector<32x128xf32>
    %78 = arith.subf %72, %77 : vector<32x128xf32>
    %c3_38 = arith.constant 3 : index
    %c0_39 = arith.constant 0 : index
    %c0_40 = arith.constant 0 : index
    %79 = vector.load %arg4[%c3_38, %c0_39, %c0_40] : memref<4x32x32xf32, #tpu.memory_space<vmem>>, vector<1x32x32xf32>
    %80 = vector.shape_cast %79 : vector<1x32x32xf32> to vector<32x32xf32>
    %c3_41 = arith.constant 3 : index
    %c0_42 = arith.constant 0 : index
    %c0_43 = arith.constant 0 : index
    %81 = vector.load %arg5[%c3_41, %c0_42, %c0_43] : memref<4x32x32xf32, #tpu.memory_space<vmem>>, vector<1x32x32xf32>
    %82 = vector.shape_cast %81 : vector<1x32x32xf32> to vector<32x32xf32>
    %cst_44 = arith.constant dense<0.000000e+00> : vector<32x128xf32>
    %83 = tpu.matmul %80, %78, %cst_44 {dimension_numbers = #tpu.dot_dimension_numbers<[1], [0], [0], [1], [0, 0, 1, 1], [], []>} : vector<32x32xf32>, vector<32x128xf32>, vector<32x128xf32> -> vector<32x128xf32>
    %84 = vector.extract_strided_slice %83 {offsets = [0, 0], sizes = [32, 32], strides = [1, 1]} : vector<32x128xf32> to vector<32x32xf32>
    %cst_45 = arith.constant dense<0.000000e+00> : vector<32x32xf32>
    %85 = tpu.matmul %84, %82, %cst_45 {dimension_numbers = #tpu.dot_dimension_numbers<[1], [0], [0], [1], [0, 0, 1, 1], [], []>} : vector<32x32xf32>, vector<32x32xf32>, vector<32x32xf32> -> vector<32x32xf32>
    %86 = vector.extract_strided_slice %83 {offsets = [0, 32], sizes = [32, 32], strides = [1, 1]} : vector<32x128xf32> to vector<32x32xf32>
    %cst_46 = arith.constant dense<0.000000e+00> : vector<32x32xf32>
    %87 = tpu.matmul %86, %82, %cst_46 {dimension_numbers = #tpu.dot_dimension_numbers<[1], [0], [0], [1], [0, 0, 1, 1], [], []>} : vector<32x32xf32>, vector<32x32xf32>, vector<32x32xf32> -> vector<32x32xf32>
    %88 = vector.extract_strided_slice %83 {offsets = [0, 64], sizes = [32, 32], strides = [1, 1]} : vector<32x128xf32> to vector<32x32xf32>
    %cst_47 = arith.constant dense<0.000000e+00> : vector<32x32xf32>
    %89 = tpu.matmul %88, %82, %cst_47 {dimension_numbers = #tpu.dot_dimension_numbers<[1], [0], [0], [1], [0, 0, 1, 1], [], []>} : vector<32x32xf32>, vector<32x32xf32>, vector<32x32xf32> -> vector<32x32xf32>
    %90 = vector.extract_strided_slice %83 {offsets = [0, 96], sizes = [32, 32], strides = [1, 1]} : vector<32x128xf32> to vector<32x32xf32>
    %cst_48 = arith.constant dense<0.000000e+00> : vector<32x32xf32>
    %91 = tpu.matmul %90, %82, %cst_48 {dimension_numbers = #tpu.dot_dimension_numbers<[1], [0], [0], [1], [0, 0, 1, 1], [], []>} : vector<32x32xf32>, vector<32x32xf32>, vector<32x32xf32> -> vector<32x32xf32>
    %92 = tpu.concatenate %85, %87, %89, %91 in 1 : vector<32x32xf32>, vector<32x32xf32>, vector<32x32xf32>, vector<32x32xf32> -> vector<32x128xf32>
    %93 = arith.subf %92, %68 : vector<32x128xf32>
    %94 = vector.broadcast %74 : f32 to vector<32x128xf32>
    %95 = arith.mulf %94, %93 : vector<32x128xf32>
    %96 = arith.addf %92, %95 : vector<32x128xf32>
    %c0_49 = arith.constant 0 : index
    %c0_50 = arith.constant 0 : index
    %97 = vector.load %arg6[%c0_49, %c0_50] : memref<32x128xf32, #tpu.memory_space<vmem>>, vector<32x128xf32>
    tpu.vector_store %arg6[%c0_49, %c0_50], %96 {strides = array<i32>} : memref<32x128xf32, #tpu.memory_space<vmem>>, vector<32x128xf32>,
    %c0_51 = arith.constant 0 : index
    %c0_52 = arith.constant 0 : index
    %98 = vector.load %arg7[%c0_51, %c0_52] : memref<32x128xf32, #tpu.memory_space<vmem>>, vector<32x128xf32>
    tpu.vector_store %arg7[%c0_51, %c0_52], %92 {strides = array<i32>} : memref<32x128xf32, #tpu.memory_space<vmem>>, vector<32x128xf32>,
    return
  }
  func.func @transform_0(%arg0: i32, %arg1: memref<4xf32, #tpu.memory_space<smem>>, %arg2: memref<4xf32, #tpu.memory_space<smem>>) -> (i32, i32) {
    %c0_i32 = arith.constant 0 : i32
    %c0_i32_0 = arith.constant 0 : i32
    return %c0_i32, %arg0 : i32, i32
  }
  func.func @transform_1(%arg0: i32, %arg1: memref<4xf32, #tpu.memory_space<smem>>, %arg2: memref<4xf32, #tpu.memory_space<smem>>) -> (i32, i32, i32) {
    %c0_i32 = arith.constant 0 : i32
    %c0_i32_0 = arith.constant 0 : i32
    %c0_i32_1 = arith.constant 0 : i32
    %c0_i32_2 = arith.constant 0 : i32
    return %c0_i32, %c0_i32_0, %c0_i32_1 : i32, i32, i32
  }
  func.func @transform_2(%arg0: i32, %arg1: memref<4xf32, #tpu.memory_space<smem>>, %arg2: memref<4xf32, #tpu.memory_space<smem>>) -> (i32, i32, i32) {
    %c0_i32 = arith.constant 0 : i32
    %c0_i32_0 = arith.constant 0 : i32
    %c0_i32_1 = arith.constant 0 : i32
    %c0_i32_2 = arith.constant 0 : i32
    return %c0_i32, %c0_i32_0, %c0_i32_1 : i32, i32, i32
  }
  func.func @transform_3(%arg0: i32, %arg1: memref<4xf32, #tpu.memory_space<smem>>, %arg2: memref<4xf32, #tpu.memory_space<smem>>) -> (i32, i32) {
    %c0_i32 = arith.constant 0 : i32
    %c0_i32_0 = arith.constant 0 : i32
    return %c0_i32, %arg0 : i32, i32
  }
  func.func @transform_4(%arg0: i32, %arg1: memref<4xf32, #tpu.memory_space<smem>>, %arg2: memref<4xf32, #tpu.memory_space<smem>>) -> (i32, i32) {
    %c0_i32 = arith.constant 0 : i32
    %c0_i32_0 = arith.constant 0 : i32
    return %c0_i32, %arg0 : i32, i32
  }
}

</mosaic_0001>

<llo_original>
// kernel: unfolded_cadzow_up.1
$region0: #{unfolded_cadzow_up.1}
  #allocation0 [shape = 'u32[]', space=smem, size = 0x4, offset = 0x4, fixed_abs, tag = 'smem constant byte address 0x4 - core index']
  #allocation1 [shape = 'u32[144,128]{1,0:T(1,128)}', space=vmem, size = 0x12000, scoped, tag = 'internal scratch']
  #allocation2 [shape = 's32[1]{0}', space=sflag, size = 0x4, scoped, tag = 'scoped memory for unfolded_cadzow_up.1']
  #allocation3 [shape = 'u8[512]{0}', space=smem, size = 0x200, scoped, tag = 'prefetched SMEM operand 0']
  #allocation4 [shape = 'u8[512]{0}', space=smem, size = 0x200, scoped, tag = 'prefetched SMEM operand 1']
  %s0 = inlined_call_operand.vmem [shape: f32[4], index: 0, kind: input, shape index: {}]
  %s1 = inlined_call_operand.vmem [shape: f32[4], index: 1, kind: input, shape index: {}]
  %s2 = inlined_call_operand.vmem [shape: f32[32,512], index: 2, kind: input, shape index: {}]
  %s3 = inlined_call_operand.vmem [shape: f32[4,32,32], index: 3, kind: input, shape index: {}]
  %s4 = inlined_call_operand.vmem [shape: f32[4,32,32], index: 4, kind: input, shape index: {}]
  %s5 = inlined_call_operand.vmem [shape: f32[32,512], index: 5, kind: output, shape index: {0}]
  %s6 = inlined_call_operand.vmem [shape: f32[32,512], index: 6, kind: output, shape index: {1}]
  %7 = xla_tuple %s5, %s6
  %s8 = sld [smem:[#allocation0]]
  $region159: #{unfolded_cadzow_up.1} parent=0
    _
  %s10 = ssub.s32 1, %s8
  %s11 = scalar_select 0, %s10, %s8
  %s12 = sshll.u32 %s0, 4
  %s13 = int_to_ptr.vmem [resolvable:$true] %s12
  %15 = dma.vmem_to_smem %s13, 16, [#allocation3], [#allocation2]
  %s16 = sshll.u32 %s1, 4
  %s17 = int_to_ptr.vmem [resolvable:$true] %s16
  %19 = dma.vmem_to_smem %s17, 16, [#allocation4], [#allocation2]
  %20 = dma.done [#allocation2], 32
  %21 = sfence
  $region1: #{unfolded_cadzow_up.1} parent=0
    #allocation5 [shape = 'u8[32768]{0}', space=vmem, size = 0x8000, scoped, tag = 'input window, operand 2']
    #allocation6 [shape = 'u8[32768]{0}', space=vmem, size = 0x8000, scoped, tag = 'output window, operand 0']
    #allocation7 [shape = 'u8[32768]{0}', space=vmem, size = 0x8000, scoped, tag = 'output window, operand 1']
    loop: start=0, step=1, limit=6
    $region2: #{unfolded_cadzow_up.1} parent=1 // loop_pre_header
      _
    $region3: #{unfolded_cadzow_up.1} parent=1 // loop_header
      %s23 = sphi 0, %s27
      %p24 = scmp.ge.s32.totalorder %s23, 6
      %s33 = sphi 0, %s35
      %s36 = sphi 0, %s33
      %s37 = sphi 0, %s36
      %s53 = sphi 0, %s37
      %s57 = sphi 0, %s57
      %s59 = sphi 0, %s57
      %s60 = sphi 0, %s59
      %s74 = sphi 0, %s60
      %s78 = sphi 0, %s78
      %s80 = sphi 0, %s78
      %s81 = sphi 0, %s80
      %s95 = sphi 0, %s81
      %s101 = sphi 0, %s103
      %s104 = sphi 0, %s101
      %s105 = sphi 0, %s104
      %s121 = sphi 0, %s105
      %s127 = sphi 0, %s129
      %s130 = sphi 0, %s127
      %s131 = sphi 0, %s130
      %s147 = sphi 0, %s131
    $region4: #{unfolded_cadzow_up.1} parent=1 // loop_header_branch
      %26 = sbr.rel (%p24) target = $region8
    $region5: #{unfolded_cadzow_up.1} parent=1 // loop_body
      %s28 = ssub.s32 %s23, 1
      %s29 = ssub.s32 %s23, 2
      %s30 = sadd.s32 %s23, 1
      %s31 = ssub.s32 %s23, %s30
      %p32 = scmp.eq.s32.totalorder %s31, 0
      %s34 = sadd.s32 %s33, 1
      %s35 = scalar_select %p32, %s33, %s34
      %p38 = pneg %p32
      %p39 = scmp.eq.s32.totalorder %s23, 3
      %p40 = por %p38, %p39
      %p41 = scmp.ne.s32.totalorder %s33, %s36
      %p42 = scmp.eq.s32.totalorder %s23, 0
      %p43 = por %p41, %p42
      %p44 = scmp.ne.s32.totalorder %s33, %s36
      %p45 = scmp.eq.s32.totalorder %s28, 3
      %p46 = por %p44, %p45
      %p47 = scmp.ne.s32.totalorder %s36, %s37
      %p48 = scmp.eq.s32.totalorder %s28, 0
      %p49 = por %p47, %p48
      %p50 = scmp.ne.s32.totalorder %s36, %s37
      %p51 = scmp.eq.s32.totalorder %s29, 3
      %p52 = por %p50, %p51
      %p54 = scmp.ne.s32.totalorder %s37, %s53
      %p55 = scmp.eq.s32.totalorder %s29, 0
      %p56 = por %p54, %p55
      %s58 = sadd.s32 %s57, 1
      %p61 = scmp.eq.s32.totalorder %s23, 3
      %p62 = scmp.ne.s32.totalorder %s57, %s59
      %p63 = scmp.eq.s32.totalorder %s23, 0
      %p64 = por %p62, %p63
      %p65 = scmp.ne.s32.totalorder %s57, %s59
      %p66 = scmp.eq.s32.totalorder %s28, 3
      %p67 = por %p65, %p66
      %p68 = scmp.ne.s32.totalorder %s59, %s60
      %p69 = scmp.eq.s32.totalorder %s28, 0
      %p70 = por %p68, %p69
      %p71 = scmp.ne.s32.totalorder %s59, %s60
      %p72 = scmp.eq.s32.totalorder %s29, 3
      %p73 = por %p71, %p72
      %p75 = scmp.ne.s32.totalorder %s60, %s74
      %p76 = scmp.eq.s32.totalorder %s29, 0
      %p77 = por %p75, %p76
      %s79 = sadd.s32 %s78, 1
      %p82 = scmp.eq.s32.totalorder %s23, 3
      %p83 = scmp.ne.s32.totalorder %s78, %s80
      %p84 = scmp.eq.s32.totalorder %s23, 0
      %p85 = por %p83, %p84
      %p86 = scmp.ne.s32.totalorder %s78, %s80
      %p87 = scmp.eq.s32.totalorder %s28, 3
      %p88 = por %p86, %p87
      %p89 = scmp.ne.s32.totalorder %s80, %s81
      %p90 = scmp.eq.s32.totalorder %s28, 0
      %p91 = por %p89, %p90
      %p92 = scmp.ne.s32.totalorder %s80, %s81
      %p93 = scmp.eq.s32.totalorder %s29, 3
      %p94 = por %p92, %p93
      %p96 = scmp.ne.s32.totalorder %s81, %s95
      %p97 = scmp.eq.s32.totalorder %s29, 0
      %p98 = por %p96, %p97
      %s99 = ssub.s32 %s23, %s30
      %p100 = scmp.eq.s32.totalorder %s99, 0
      %s102 = sadd.s32 %s101, 1
      %s103 = scalar_select %p100, %s101, %s102
      %p106 = pneg %p100
      %p107 = scmp.eq.s32.totalorder %s23, 3
      %p108 = por %p106, %p107
      %p109 = scmp.ne.s32.totalorder %s101, %s104
      %p110 = scmp.eq.s32.totalorder %s23, 0
      %p111 = por %p109, %p110
      %p112 = scmp.ne.s32.totalorder %s101, %s104
      %p113 = scmp.eq.s32.totalorder %s28, 3
      %p114 = por %p112, %p113
      %p115 = scmp.ne.s32.totalorder %s104, %s105
      %p116 = scmp.eq.s32.totalorder %s28, 0
      %p117 = por %p115, %p116
      %p118 = scmp.ne.s32.totalorder %s104, %s105
      %p119 = scmp.eq.s32.totalorder %s29, 3
      %p120 = por %p118, %p119
      %p122 = scmp.ne.s32.totalorder %s105, %s121
      %p123 = scmp.eq.s32.totalorder %s29, 0
      %p124 = por %p122, %p123
      %s125 = ssub.s32 %s23, %s30
      %p126 = scmp.eq.s32.totalorder %s125, 0
      %s128 = sadd.s32 %s127, 1
      %s129 = scalar_select %p126, %s127, %s128
      %p132 = pneg %p126
      %p133 = scmp.eq.s32.totalorder %s23, 3
      %p134 = por %p132, %p133
      %p135 = scmp.ne.s32.totalorder %s127, %s130
      %p136 = scmp.eq.s32.totalorder %s23, 0
      %p137 = por %p135, %p136
      %p138 = scmp.ne.s32.totalorder %s127, %s130
      %p139 = scmp.eq.s32.totalorder %s28, 3
      %p140 = por %p138, %p139
      %p141 = scmp.ne.s32.totalorder %s130, %s131
      %p142 = scmp.eq.s32.totalorder %s28, 0
      %p143 = por %p141, %p142
      %p144 = scmp.ne.s32.totalorder %s130, %s131
      %p145 = scmp.eq.s32.totalorder %s29, 3
      %p146 = por %p144, %p145
      %p148 = scmp.ne.s32.totalorder %s131, %s147
      %p149 = scmp.eq.s32.totalorder %s29, 0
      %p150 = por %p148, %p149
      %p151 = scmp.le.s32.totalorder 1, %s23
      %p152 = scmp.lt.s32.totalorder %s23, 5
      %p153 = pnand %p151, %p152
      %p154 = pneg %p153
      // Predicated region
      $region9: #{unfolded_cadzow_up.1} parent=5 // pred_check
        _
      $region10: #{unfolded_cadzow_up.1} parent=5 // pred_check_branch
        %156 = sbr.rel (%p153) target = $region12
      $region11: #{unfolded_cadzow_up.1} parent=5 // pred_region
        %s157 = ssub.s32 %s23, 1
        // Predicated region
        $region13: #{unfolded_cadzow_up.1} parent=11 // pred_check
          %p158 = pneg %p70
        $region14: #{unfolded_cadzow_up.1} parent=11 // pred_check_branch
          %160 = sbr.rel (%p158) target = $region16
        $region15: #{unfolded_cadzow_up.1} parent=11 // pred_region
          _
        $region16: #{unfolded_cadzow_up.1} parent=11 // pred_fallthru
          _
        // Predicated region
        $region17: #{unfolded_cadzow_up.1} parent=11 // pred_check
          %p161 = pneg %p91
        $region18: #{unfolded_cadzow_up.1} parent=11 // pred_check_branch
          %163 = sbr.rel (%p161) target = $region20
        $region19: #{unfolded_cadzow_up.1} parent=11 // pred_region
          _
        $region20: #{unfolded_cadzow_up.1} parent=11 // pred_fallthru
          _
      $region12: #{unfolded_cadzow_up.1} parent=5 // pred_fallthru
        _
      %p164 = scmp.lt.s32.totalorder %s23, 4
      // Predicated region
      $region21: #{unfolded_cadzow_up.1} parent=5 // pred_check
        %p165 = pneg %p164
      $region22: #{unfolded_cadzow_up.1} parent=5 // pred_check_branch
        %167 = sbr.rel (%p165) target = $region24
      $region23: #{unfolded_cadzow_up.1} parent=5 // pred_region
        // Predicated region
        $region25: #{unfolded_cadzow_up.1} parent=23 // pred_check
          %p168 = pneg %p43
        $region26: #{unfolded_cadzow_up.1} parent=23 // pred_check_branch
          %170 = sbr.rel (%p168) target = $region28
        $region27: #{unfolded_cadzow_up.1} parent=23 // pred_region
          %s171 = sand.u32 %s33, 1
          %s172 = sand.u32 %s33, 1
          %s173 = smul.addr %s172, 32
          %s174 = scalar_lea.vmem [#allocation5], %s173
          %s175 = smul.addr %s23, 8
          %s176 = scalar_lea.vmem %s2, %s175
          // Predicated region
          $region29: #{unfolded_cadzow_up.1} parent=27 // pred_check
            _
          $region30: #{unfolded_cadzow_up.1} parent=27 // pred_check_branch
            %178 = sbr.rel (0) target = $region32
          $region31: #{unfolded_cadzow_up.1} parent=27 // pred_region
            // Predicated region
            $region33: #{unfolded_cadzow_up.1} parent=31 // pred_check
              _
            $region34: #{unfolded_cadzow_up.1} parent=31 // pred_check_branch
              %180 = sbr.rel (0) target = $region36
            $region35: #{unfolded_cadzow_up.1} parent=31 // pred_region
              // Predicated region
              $region48: #{unfolded_cadzow_up.1} parent=35 // pred_check
                _
              $region49: #{unfolded_cadzow_up.1} parent=35 // pred_check_branch
                %202 = sbr.rel (0) target = $region51
              $region50: #{unfolded_cadzow_up.1} parent=35 // pred_region
                loop: start=0, step=1, limit=1
                $region52: #{unfolded_cadzow_up.1} parent=50 // loop_pre_header
                  _
                $region53: #{unfolded_cadzow_up.1} parent=50 // loop_header
                  %s204 = sphi 0, %s208
                  %p205 = scmp.ge.s32.totalorder %s204, 1
                  %s209 = sphi %s176, %s176
                  %s210 = sphi %s174, %s174
                $region54: #{unfolded_cadzow_up.1} parent=50 // loop_header_branch
                  %207 = sbr.rel (%p205) target = $region58
                $region55: #{unfolded_cadzow_up.1} parent=50 // loop_body
                  %v211 = vld [vmem:[%s209] sm:$0xff]
                  %212 = vst [vmem:[%s210] sm:$0xff] %v211
                  %v213 = vld [vmem:[%s209 + $0x20] sm:$0xff]
                  %214 = vst [vmem:[%s210 + $0x8] sm:$0xff] %v213
                  %v215 = vld [vmem:[%s209 + $0x40] sm:$0xff]
                  %216 = vst [vmem:[%s210 + $0x10] sm:$0xff] %v215
                  %v217 = vld [vmem:[%s209 + $0x60] sm:$0xff]
                  %218 = vst [vmem:[%s210 + $0x18] sm:$0xff] %v217
                $region56: #{unfolded_cadzow_up.1} parent=50 // loop_footer
                  %s208 = sadd.s32 1, %s204
                $region57: #{unfolded_cadzow_up.1} parent=50 // loop_footer_branch
                  %203 = sbr.rel target = $region53
                $region58: #{unfolded_cadzow_up.1} parent=50 // loop_exit
                  _
              $region51: #{unfolded_cadzow_up.1} parent=35 // pred_fallthru
                _
              // Predicated region
              $region59: #{unfolded_cadzow_up.1} parent=35 // pred_check
                _
              $region60: #{unfolded_cadzow_up.1} parent=35 // pred_check_branch
                %220 = sbr.rel target = $region62
              $region61: #{unfolded_cadzow_up.1} parent=35 // pred_region
                _
              $region62: #{unfolded_cadzow_up.1} parent=35 // pred_fallthru
                _
            $region36: #{unfolded_cadzow_up.1} parent=31 // pred_fallthru
              _
            // Predicated region
            $region37: #{unfolded_cadzow_up.1} parent=31 // pred_check
              _
            $region38: #{unfolded_cadzow_up.1} parent=31 // pred_check_branch
              %182 = sbr.rel target = $region40
            $region39: #{unfolded_cadzow_up.1} parent=31 // pred_region
              %s184 = ssub.s32 256, 1
              loop: start=0, step=1, limit=1
              $region41: #{unfolded_cadzow_up.1} parent=39 // loop_pre_header
                _
              $region42: #{unfolded_cadzow_up.1} parent=39 // loop_header
                %s186 = sphi 0, %s190
                %p187 = scmp.ge.s32.totalorder %s186, 1
                %s191 = sphi %s176, %s176
                %s192 = sphi %s174, %s174
              $region43: #{unfolded_cadzow_up.1} parent=39 // loop_header_branch
                %189 = sbr.rel (%p187) target = $region47
              $region44: #{unfolded_cadzow_up.1} parent=39 // loop_body
                %v193 = vld [vmem:[%s191] sm:%s184]
                %194 = vst [vmem:[%s192] sm:%s184] %v193
                %v195 = vld [vmem:[%s191 + $0x20] sm:%s184]
                %196 = vst [vmem:[%s192 + $0x8] sm:%s184] %v195
                %v197 = vld [vmem:[%s191 + $0x40] sm:%s184]
                %198 = vst [vmem:[%s192 + $0x10] sm:%s184] %v197
                %v199 = vld [vmem:[%s191 + $0x60] sm:%s184]
                %200 = vst [vmem:[%s192 + $0x18] sm:%s184] %v199
              $region45: #{unfolded_cadzow_up.1} parent=39 // loop_footer
                %s190 = sadd.s32 1, %s186
              $region46: #{unfolded_cadzow_up.1} parent=39 // loop_footer_branch
                %185 = sbr.rel target = $region42
              $region47: #{unfolded_cadzow_up.1} parent=39 // loop_exit
                _
            $region40: #{unfolded_cadzow_up.1} parent=31 // pred_fallthru
              _
          $region32: #{unfolded_cadzow_up.1} parent=27 // pred_fallthru
            _
          %221 = vnop
        $region28: #{unfolded_cadzow_up.1} parent=23 // pred_fallthru
          _
      $region24: #{unfolded_cadzow_up.1} parent=5 // pred_fallthru
        _
      %p222 = scmp.le.s32.totalorder 1, %s23
      %p223 = scmp.lt.s32.totalorder %s23, 5
      %p224 = pnand %p222, %p223
      %p225 = pneg %p224
      // Predicated region
      $region63: #{unfolded_cadzow_up.1} parent=5 // pred_check
        _
      $region64: #{unfolded_cadzow_up.1} parent=5 // pred_check_branch
        %227 = sbr.rel (%p224) target = $region66
      $region65: #{unfolded_cadzow_up.1} parent=5 // pred_region
        %s228 = ssub.s32 %s23, 1
        %s229 = sand.u32 %s36, 1
        %s230 = sand.u32 %s36, 1
        %s231 = smul.addr %s230, 32
        %s232 = scalar_lea.vmem [#allocation5], %s231
        // Predicated region
        $region67: #{unfolded_cadzow_up.1} parent=65 // pred_check
          %p233 = pneg %p49
        $region68: #{unfolded_cadzow_up.1} parent=65 // pred_check_branch
          %235 = sbr.rel (%p233) target = $region70
        $region69: #{unfolded_cadzow_up.1} parent=65 // pred_region
          _
        $region70: #{unfolded_cadzow_up.1} parent=65 // pred_fallthru
          _
        %s236 = sand.u32 %s36, 1
        %s237 = sand.u32 %s36, 1
        %s238 = smul.addr %s237, 32
        %s239 = scalar_lea.vmem [#allocation5], %s238
        %p240 = pneg %p49
        %p241 = pneg %p46
        %p242 = pneg %p70
        %p243 = pneg %p67
        %p244 = pneg %p91
        %p245 = pneg %p88
        %p246 = pneg %p117
        %p247 = pneg %p114
        %s248 = sand.u32 %s104, 1
        %s249 = sand.u32 %s104, 1
        %s250 = smul.addr %s249, 32
        %s251 = scalar_lea.vmem [#allocation6], %s250
        %p252 = pneg %p143
        %p253 = pneg %p140
        %s254 = sand.u32 %s130, 1
        %s255 = sand.u32 %s130, 1
        %s256 = smul.addr %s255, 32
        %s257 = scalar_lea.vmem [#allocation7], %s256
        %v258 = vld [vmem:[%s232] sm:$0xff]
        %v259 = vld [vmem:[%s232 + $0x8] sm:$0xff]
        %v260 = vld [vmem:[%s232 + $0x10] sm:$0xff]
        %v261 = vld [vmem:[%s232 + $0x18] sm:$0xff]
        %s262 = sld [smem:[#allocation3]]
        %s263 = sld [smem:[#allocation4]]
        %v264 = vsub.f32 %v258, %v258
        %v265 = vsub.f32 %v259, %v259
        %v266 = vsub.f32 %v260, %v260
        %v267 = vsub.f32 %v261, %v261
        %v268 = vstv %s262
        %v269 = vmul.f32 %v268, %v264
        %v270 = vmul.f32 %v268, %v265
        %v271 = vmul.f32 %v268, %v266
        %v272 = vmul.f32 %v268, %v267
        %v273 = vsub.f32 %v258, %v269
        %v274 = vsub.f32 %v259, %v270
        %v275 = vsub.f32 %v260, %v271
        %v276 = vsub.f32 %v261, %v272
        %v277 = vld [vmem:[%s3] sm:$0xff]
        %v278 = vld [vmem:[%s3 + $0x8] sm:$0xff]
        %v279 = vld [vmem:[%s3 + $0x10] sm:$0xff]
        %v280 = vld [vmem:[%s3 + $0x18] sm:$0xff]
        %v281 = vld [vmem:[%s4] sm:$0xff]
        %v282 = vld [vmem:[%s4 + $0x8] sm:$0xff]
        %v283 = vld [vmem:[%s4 + $0x10] sm:$0xff]
        %v284 = vld [vmem:[%s4 + $0x18] sm:$0xff]
        %vm285 = vcmask 261120
        %v287 = vsel %vm285, %v277, 0
        %v290 = vsel %vm285, %v278, 0
        %v293 = vsel %vm285, %v279, 0
        %v296 = vsel %vm285, %v280, 0
        %298 = vmatprep.subr.mxu0 0.0
        %299 = vmatpush1.msra.mxu0 0.0
        %300 = vmatprep.subr.mxu0 0.0
        %301 = vmatpush1.msra.mxu0 0.0
        %302 = vmatprep.subr.mxu0 0.0
        %303 = vmatpush1.msra.mxu0 0.0
        %304 = vmatprep.subr.mxu0 0.0
        %305 = vmatpush1.msra.mxu0 0.0
        %306 = vmatprep.subr.mxu0 0.0
        %307 = vmatpush1.msra.mxu0 0.0
        %308 = vmatprep.subr.mxu0 0.0
        %309 = vmatpush1.msra.mxu0 0.0
        %310 = vmatprep.subr.mxu0 0.0
        %311 = vmatpush1.msra.mxu0 0.0
        %312 = vmatprep.subr.mxu0 0.0
        %313 = vmatpush1.msra.mxu0 0.0
        %314 = vmatprep.subr.mxu0 0.0
        %315 = vmatpush1.msra.mxu0 0.0
        %316 = vmatprep.subr.mxu0 0.0
        %317 = vmatpush1.msra.mxu0 0.0
        %318 = vmatprep.subr.mxu0 0.0
        %319 = vmatpush1.msra.mxu0 0.0
        %320 = vmatprep.subr.mxu0 0.0
        %321 = vmatpush1.msra.mxu0 0.0
        %322 = vmatprep.subr.mxu0 0.0
        %323 = vmatpush1.msra.mxu0 %v276
        %324 = vmatprep.subr.mxu0 0.0
        %325 = vmatpush1.msra.mxu0 %v275
        %326 = vmatprep.subr.mxu0 0.0
        %327 = vmatpush1.msra.mxu0 %v274
        %328 = vmatprep.subr.mxu0 0.0
        %329 = vmatpush1.msra.mxu0 %v273
        %330 = vmatprep.subr.mxu0 0.0
        %331 = vmatpush2.msra.mxu0 0.0
        %332 = vmatprep.subr.mxu0 0.0
        %333 = vmatpush2.msra.mxu0 0.0
        %334 = vmatprep.subr.mxu0 0.0
        %335 = vmatpush2.msra.mxu0 0.0
        %336 = vmatprep.subr.mxu0 0.0
        %337 = vmatpush2.msra.mxu0 0.0
        %338 = vmatprep.subr.mxu0 0.0
        %339 = vmatpush2.msra.mxu0 0.0
        %340 = vmatprep.subr.mxu0 0.0
        %341 = vmatpush2.msra.mxu0 0.0
        %342 = vmatprep.subr.mxu0 0.0
        %343 = vmatpush2.msra.mxu0 0.0
        %344 = vmatprep.subr.mxu0 0.0
        %345 = vmatpush2.msra.mxu0 0.0
        %346 = vmatprep.subr.mxu0 0.0
        %347 = vmatpush2.msra.mxu0 0.0
        %348 = vmatprep.subr.mxu0 0.0
        %349 = vmatpush2.msra.mxu0 0.0
        %350 = vmatprep.subr.mxu0 0.0
        %351 = vmatpush2.msra.mxu0 0.0
        %352 = vmatprep.subr.mxu0 0.0
        %353 = vmatpush2.msra.mxu0 0.0
        %354 = vmatprep.subr.mxu0 0.0
        %355 = vmatpush2.msra.mxu0 0.0
        %356 = vmatprep.subr.mxu0 0.0
        %357 = vmatpush2.msra.mxu0 0.0
        %358 = vmatprep.subr.mxu0 0.0
        %359 = vmatpush2.msra.mxu0 0.0
        %360 = vmatprep.subr.mxu0 0.0
        %361 = vmatpush2.msra.mxu0 0.0
        %362 = vmatprep.mubr.f32.mxu0 0.0
        %363 = vmatmul.mubr.f32.gmra.mxu0 %v287
        %v364 = vpop.f32.mrf.mxu0
        %v365 = vadd.f32 0.0, %v364
        %v366 = vpop.f32.mrf.mxu0
        %367 = vmatprep.mubr.f32.mxu0 0.0
        %368 = vmatmul.mubr.f32.gmra.mxu0 %v290
        %v369 = vpop.f32.mrf.mxu0
        %v370 = vadd.f32 0.0, %v369
        %v371 = vpop.f32.mrf.mxu0
        %372 = vmatprep.mubr.f32.mxu0 0.0
        %373 = vmatmul.mubr.f32.gmra.mxu0 %v293
        %v374 = vpop.f32.mrf.mxu0
        %v375 = vadd.f32 0.0, %v374
        %v376 = vpop.f32.mrf.mxu0
        %377 = vmatprep.mubr.f32.mxu0 0.0
        %378 = vmatmul.mubr.f32.gmra.mxu0 %v296
        %v379 = vpop.f32.mrf.mxu0
        %v380 = vadd.f32 0.0, %v379
        %v381 = vpop.f32.mrf.mxu0
        %382 = vdwg.mxu0
        %v384 = vsel %vm285, %v365, 0
        %v387 = vsel %vm285, %v370, 0
        %v390 = vsel %vm285, %v375, 0
        %v393 = vsel %vm285, %v380, 0
        %395 = vmatprep.subr.mxu0 0.0
        %396 = vmatpush1.msra.mxu0 0.0
        %397 = vmatprep.subr.mxu0 0.0
        %398 = vmatpush1.msra.mxu0 0.0
        %399 = vmatprep.subr.mxu0 0.0
        %400 = vmatpush1.msra.mxu0 0.0
        %401 = vmatprep.subr.mxu0 0.0
        %402 = vmatpush1.msra.mxu0 0.0
        %403 = vmatprep.subr.mxu0 0.0
        %404 = vmatpush1.msra.mxu0 0.0
        %405 = vmatprep.subr.mxu0 0.0
        %406 = vmatpush1.msra.mxu0 0.0
        %407 = vmatprep.subr.mxu0 0.0
        %408 = vmatpush1.msra.mxu0 0.0
        %409 = vmatprep.subr.mxu0 0.0
        %410 = vmatpush1.msra.mxu0 0.0
        %411 = vmatprep.subr.mxu0 0.0
        %412 = vmatpush1.msra.mxu0 0.0
        %413 = vmatprep.subr.mxu0 0.0
        %414 = vmatpush1.msra.mxu0 0.0
        %415 = vmatprep.subr.mxu0 0.0
        %416 = vmatpush1.msra.mxu0 0.0
        %417 = vmatprep.subr.mxu0 0.0
        %418 = vmatpush1.msra.mxu0 0.0
        %419 = vmatprep.subr.mxu0 0.0
        %420 = vmatpush1.msra.mxu0 %v284
        %421 = vmatprep.subr.mxu0 0.0
        %422 = vmatpush1.msra.mxu0 %v283
        %423 = vmatprep.subr.mxu0 0.0
        %424 = vmatpush1.msra.mxu0 %v282
        %425 = vmatprep.subr.mxu0 0.0
        %426 = vmatpush1.msra.mxu0 %v281
        %427 = vmatprep.subr.mxu0 0.0
        %428 = vmatpush2.msra.mxu0 0.0
        %429 = vmatprep.subr.mxu0 0.0
        %430 = vmatpush2.msra.mxu0 0.0
        %431 = vmatprep.subr.mxu0 0.0
        %432 = vmatpush2.msra.mxu0 0.0
        %433 = vmatprep.subr.mxu0 0.0
        %434 = vmatpush2.msra.mxu0 0.0
        %435 = vmatprep.subr.mxu0 0.0
        %436 = vmatpush2.msra.mxu0 0.0
        %437 = vmatprep.subr.mxu0 0.0
        %438 = vmatpush2.msra.mxu0 0.0
        %439 = vmatprep.subr.mxu0 0.0
        %440 = vmatpush2.msra.mxu0 0.0
        %441 = vmatprep.subr.mxu0 0.0
        %442 = vmatpush2.msra.mxu0 0.0
        %443 = vmatprep.subr.mxu0 0.0
        %444 = vmatpush2.msra.mxu0 0.0
        %445 = vmatprep.subr.mxu0 0.0
        %446 = vmatpush2.msra.mxu0 0.0
        %447 = vmatprep.subr.mxu0 0.0
        %448 = vmatpush2.msra.mxu0 0.0
        %449 = vmatprep.subr.mxu0 0.0
        %450 = vmatpush2.msra.mxu0 0.0
        %451 = vmatprep.subr.mxu0 0.0
        %452 = vmatpush2.msra.mxu0 0.0
        %453 = vmatprep.subr.mxu0 0.0
        %454 = vmatpush2.msra.mxu0 0.0
        %455 = vmatprep.subr.mxu0 0.0
        %456 = vmatpush2.msra.mxu0 0.0
        %457 = vmatprep.subr.mxu0 0.0
        %458 = vmatpush2.msra.mxu0 0.0
        %459 = vmatprep.mubr.f32.mxu0 0.0
        %460 = vmatmul.mubr.f32.gmra.mxu0 %v384
        %v461 = vpop.f32.mrf.mxu0
        %v462 = vadd.f32 0.0, %v461
        %v463 = vpop.f32.mrf.mxu0
        %464 = vmatprep.mubr.f32.mxu0 0.0
        %465 = vmatmul.mubr.f32.gmra.mxu0 %v387
        %v466 = vpop.f32.mrf.mxu0
        %v467 = vadd.f32 0.0, %v466
        %v468 = vpop.f32.mrf.mxu0
        %469 = vmatprep.mubr.f32.mxu0 0.0
        %470 = vmatmul.mubr.f32.gmra.mxu0 %v390
        %v471 = vpop.f32.mrf.mxu0
        %v472 = vadd.f32 0.0, %v471
        %v473 = vpop.f32.mrf.mxu0
        %474 = vmatprep.mubr.f32.mxu0 0.0
        %475 = vmatmul.mubr.f32.gmra.mxu0 %v393
        %v476 = vpop.f32.mrf.mxu0
        %v477 = vadd.f32 0.0, %v476
        %v478 = vpop.f32.mrf.mxu0
        %479 = vdwg.mxu0
        %480 = vrot.lane.b32.xlu0 %v365, 96
        %v481 = vpop.permute.xlu0 %480
        %482 = vrot.lane.b32.xlu0 %v370, 96
        %v483 = vpop.permute.xlu0 %482
        %484 = vrot.lane.b32.xlu0 %v375, 96
        %v485 = vpop.permute.xlu0 %484
        %486 = vrot.lane.b32.xlu0 %v380, 96
        %v487 = vpop.permute.xlu0 %486
        %v488 = vsel %vm285, %v481, 0
        %v490 = vsel %vm285, %v483, 0
        %v492 = vsel %vm285, %v485, 0
        %v494 = vsel %vm285, %v487, 0
        %496 = vmatprep.subr.mxu0 0.0
        %497 = vmatpush1.msra.mxu0 0.0
        %498 = vmatprep.subr.mxu0 0.0
        %499 = vmatpush1.msra.mxu0 0.0
        %500 = vmatprep.subr.mxu0 0.0
        %501 = vmatpush1.msra.mxu0 0.0
        %502 = vmatprep.subr.mxu0 0.0
        %503 = vmatpush1.msra.mxu0 0.0
        %504 = vmatprep.subr.mxu0 0.0
        %505 = vmatpush1.msra.mxu0 0.0
        %506 = vmatprep.subr.mxu0 0.0
        %507 = vmatpush1.msra.mxu0 0.0
        %508 = vmatprep.subr.mxu0 0.0
        %509 = vmatpush1.msra.mxu0 0.0
        %510 = vmatprep.subr.mxu0 0.0
        %511 = vmatpush1.msra.mxu0 0.0
        %512 = vmatprep.subr.mxu0 0.0
        %513 = vmatpush1.msra.mxu0 0.0
        %514 = vmatprep.subr.mxu0 0.0
        %515 = vmatpush1.msra.mxu0 0.0
        %516 = vmatprep.subr.mxu0 0.0
        %517 = vmatpush1.msra.mxu0 0.0
        %518 = vmatprep.subr.mxu0 0.0
        %519 = vmatpush1.msra.mxu0 0.0
        %520 = vmatprep.subr.mxu0 0.0
        %521 = vmatpush1.msra.mxu0 %v284
        %522 = vmatprep.subr.mxu0 0.0
        %523 = vmatpush1.msra.mxu0 %v283
        %524 = vmatprep.subr.mxu0 0.0
        %525 = vmatpush1.msra.mxu0 %v282
        %526 = vmatprep.subr.mxu0 0.0
        %527 = vmatpush1.msra.mxu0 %v281
        %528 = vmatprep.subr.mxu0 0.0
        %529 = vmatpush2.msra.mxu0 0.0
        %530 = vmatprep.subr.mxu0 0.0
        %531 = vmatpush2.msra.mxu0 0.0
        %532 = vmatprep.subr.mxu0 0.0
        %533 = vmatpush2.msra.mxu0 0.0
        %534 = vmatprep.subr.mxu0 0.0
        %535 = vmatpush2.msra.mxu0 0.0
        %536 = vmatprep.subr.mxu0 0.0
        %537 = vmatpush2.msra.mxu0 0.0
        %538 = vmatprep.subr.mxu0 0.0
        %539 = vmatpush2.msra.mxu0 0.0
        %540 = vmatprep.subr.mxu0 0.0
        %541 = vmatpush2.msra.mxu0 0.0
        %542 = vmatprep.subr.mxu0 0.0
        %543 = vmatpush2.msra.mxu0 0.0
        %544 = vmatprep.subr.mxu0 0.0
        %545 = vmatpush2.msra.mxu0 0.0
        %546 = vmatprep.subr.mxu0 0.0
        %547 = vmatpush2.msra.mxu0 0.0
        %548 = vmatprep.subr.mxu0 0.0
        %549 = vmatpush2.msra.mxu0 0.0
        %550 = vmatprep.subr.mxu0 0.0
        %551 = vmatpush2.msra.mxu0 0.0
        %552 = vmatprep.subr.mxu0 0.0
        %553 = vmatpush2.msra.mxu0 0.0
        %554 = vmatprep.subr.mxu0 0.0
        %555 = vmatpush2.msra.mxu0 0.0
        %556 = vmatprep.subr.mxu0 0.0
        %557 = vmatpush2.msra.mxu0 0.0
        %558 = vmatprep.subr.mxu0 0.0
        %559 = vmatpush2.msra.mxu0 0.0
        %560 = vmatprep.mubr.f32.mxu0 0.0
        %561 = vmatmul.mubr.f32.gmra.mxu0 %v488
        %v562 = vpop.f32.mrf.mxu0
        %v563 = vadd.f32 0.0, %v562
        %v564 = vpop.f32.mrf.mxu0
        %565 = vmatprep.mubr.f32.mxu0 0.0
        %566 = vmatmul.mubr.f32.gmra.mxu0 %v490
        %v567 = vpop.f32.mrf.mxu0
        %v568 = vadd.f32 0.0, %v567
        %v569 = vpop.f32.mrf.mxu0
        %570 = vmatprep.mubr.f32.mxu0 0.0
        %571 = vmatmul.mubr.f32.gmra.mxu0 %v492
        %v572 = vpop.f32.mrf.mxu0
        %v573 = vadd.f32 0.0, %v572
        %v574 = vpop.f32.mrf.mxu0
        %575 = vmatprep.mubr.f32.mxu0 0.0
        %576 = vmatmul.mubr.f32.gmra.mxu0 %v494
        %v577 = vpop.f32.mrf.mxu0
        %v578 = vadd.f32 0.0, %v577
        %v579 = vpop.f32.mrf.mxu0
        %580 = vdwg.mxu0
        %581 = vrot.lane.b32.xlu0 %v365, 64
        %v582 = vpop.permute.xlu0 %581
        %583 = vrot.lane.b32.xlu0 %v370, 64
        %v584 = vpop.permute.xlu0 %583
        %585 = vrot.lane.b32.xlu0 %v375, 64
        %v586 = vpop.permute.xlu0 %585
        %587 = vrot.lane.b32.xlu0 %v380, 64
        %v588 = vpop.permute.xlu0 %587
        %v589 = vsel %vm285, %v582, 0
        %v591 = vsel %vm285, %v584, 0
        %v593 = vsel %vm285, %v586, 0
        %v595 = vsel %vm285, %v588, 0
        %597 = vmatprep.subr.mxu0 0.0
        %598 = vmatpush1.msra.mxu0 0.0
        %599 = vmatprep.subr.mxu0 0.0
        %600 = vmatpush1.msra.mxu0 0.0
        %601 = vmatprep.subr.mxu0 0.0
        %602 = vmatpush1.msra.mxu0 0.0
        %603 = vmatprep.subr.mxu0 0.0
        %604 = vmatpush1.msra.mxu0 0.0
        %605 = vmatprep.subr.mxu0 0.0
        %606 = vmatpush1.msra.mxu0 0.0
        %607 = vmatprep.subr.mxu0 0.0
        %608 = vmatpush1.msra.mxu0 0.0
        %609 = vmatprep.subr.mxu0 0.0
        %610 = vmatpush1.msra.mxu0 0.0
        %611 = vmatprep.subr.mxu0 0.0
        %612 = vmatpush1.msra.mxu0 0.0
        %613 = vmatprep.subr.mxu0 0.0
        %614 = vmatpush1.msra.mxu0 0.0
        %615 = vmatprep.subr.mxu0 0.0
        %616 = vmatpush1.msra.mxu0 0.0
        %617 = vmatprep.subr.mxu0 0.0
        %618 = vmatpush1.msra.mxu0 0.0
        %619 = vmatprep.subr.mxu0 0.0
        %620 = vmatpush1.msra.mxu0 0.0
        %621 = vmatprep.subr.mxu0 0.0
        %622 = vmatpush1.msra.mxu0 %v284
        %623 = vmatprep.subr.mxu0 0.0
        %624 = vmatpush1.msra.mxu0 %v283
        %625 = vmatprep.subr.mxu0 0.0
        %626 = vmatpush1.msra.mxu0 %v282
        %627 = vmatprep.subr.mxu0 0.0
        %628 = vmatpush1.msra.mxu0 %v281
        %629 = vmatprep.subr.mxu0 0.0
        %630 = vmatpush2.msra.mxu0 0.0
        %631 = vmatprep.subr.mxu0 0.0
        %632 = vmatpush2.msra.mxu0 0.0
        %633 = vmatprep.subr.mxu0 0.0
        %634 = vmatpush2.msra.mxu0 0.0
        %635 = vmatprep.subr.mxu0 0.0
        %636 = vmatpush2.msra.mxu0 0.0
        %637 = vmatprep.subr.mxu0 0.0
        %638 = vmatpush2.msra.mxu0 0.0
        %639 = vmatprep.subr.mxu0 0.0
        %640 = vmatpush2.msra.mxu0 0.0
        %641 = vmatprep.subr.mxu0 0.0
        %642 = vmatpush2.msra.mxu0 0.0
        %643 = vmatprep.subr.mxu0 0.0
        %644 = vmatpush2.msra.mxu0 0.0
        %645 = vmatprep.subr.mxu0 0.0
        %646 = vmatpush2.msra.mxu0 0.0
        %647 = vmatprep.subr.mxu0 0.0
        %648 = vmatpush2.msra.mxu0 0.0
        %649 = vmatprep.subr.mxu0 0.0
        %650 = vmatpush2.msra.mxu0 0.0
        %651 = vmatprep.subr.mxu0 0.0
        %652 = vmatpush2.msra.mxu0 0.0
        %653 = vmatprep.subr.mxu0 0.0
        %654 = vmatpush2.msra.mxu0 0.0
        %655 = vmatprep.subr.mxu0 0.0
        %656 = vmatpush2.msra.mxu0 0.0
        %657 = vmatprep.subr.mxu0 0.0
        %658 = vmatpush2.msra.mxu0 0.0
        %659 = vmatprep.subr.mxu0 0.0
        %660 = vmatpush2.msra.mxu0 0.0
        %661 = vmatprep.mubr.f32.mxu0 0.0
        %662 = vmatmul.mubr.f32.gmra.mxu0 %v589
        %v663 = vpop.f32.mrf.mxu0
        %v664 = vadd.f32 0.0, %v663
        %v665 = vpop.f32.mrf.mxu0
        %666 = vmatprep.mubr.f32.mxu0 0.0
        %667 = vmatmul.mubr.f32.gmra.mxu0 %v591
        %v668 = vpop.f32.mrf.mxu0
        %v669 = vadd.f32 0.0, %v668
        %v670 = vpop.f32.mrf.mxu0
        %671 = vmatprep.mubr.f32.mxu0 0.0
        %672 = vmatmul.mubr.f32.gmra.mxu0 %v593
        %v673 = vpop.f32.mrf.mxu0
        %v674 = vadd.f32 0.0, %v673
        %v675 = vpop.f32.mrf.mxu0
        %676 = vmatprep.mubr.f32.mxu0 0.0
        %677 = vmatmul.mubr.f32.gmra.mxu0 %v595
        %v678 = vpop.f32.mrf.mxu0
        %v679 = vadd.f32 0.0, %v678
        %v680 = vpop.f32.mrf.mxu0
        %681 = vdwg.mxu0
        %682 = vrot.lane.b32.xlu0 %v365, 32
        %v683 = vpop.permute.xlu0 %682
        %684 = vrot.lane.b32.xlu0 %v370, 32
        %v685 = vpop.permute.xlu0 %684
        %686 = vrot.lane.b32.xlu0 %v375, 32
        %v687 = vpop.permute.xlu0 %686
        %688 = vrot.lane.b32.xlu0 %v380, 32
        %v689 = vpop.permute.xlu0 %688
        %v690 = vsel %vm285, %v683, 0
        %v692 = vsel %vm285, %v685, 0
        %v694 = vsel %vm285, %v687, 0
        %v696 = vsel %vm285, %v689, 0
        %698 = vmatprep.subr.mxu0 0.0
        %699 = vmatpush1.msra.mxu0 0.0
        %700 = vmatprep.subr.mxu0 0.0
        %701 = vmatpush1.msra.mxu0 0.0
        %702 = vmatprep.subr.mxu0 0.0
        %703 = vmatpush1.msra.mxu0 0.0
        %704 = vmatprep.subr.mxu0 0.0
        %705 = vmatpush1.msra.mxu0 0.0
        %706 = vmatprep.subr.mxu0 0.0
        %707 = vmatpush1.msra.mxu0 0.0
        %708 = vmatprep.subr.mxu0 0.0
        %709 = vmatpush1.msra.mxu0 0.0
        %710 = vmatprep.subr.mxu0 0.0
        %711 = vmatpush1.msra.mxu0 0.0
        %712 = vmatprep.subr.mxu0 0.0
        %713 = vmatpush1.msra.mxu0 0.0
        %714 = vmatprep.subr.mxu0 0.0
        %715 = vmatpush1.msra.mxu0 0.0
        %716 = vmatprep.subr.mxu0 0.0
        %717 = vmatpush1.msra.mxu0 0.0
        %718 = vmatprep.subr.mxu0 0.0
        %719 = vmatpush1.msra.mxu0 0.0
        %720 = vmatprep.subr.mxu0 0.0
        %721 = vmatpush1.msra.mxu0 0.0
        %722 = vmatprep.subr.mxu0 0.0
        %723 = vmatpush1.msra.mxu0 %v284
        %724 = vmatprep.subr.mxu0 0.0
        %725 = vmatpush1.msra.mxu0 %v283
        %726 = vmatprep.subr.mxu0 0.0
        %727 = vmatpush1.msra.mxu0 %v282
        %728 = vmatprep.subr.mxu0 0.0
        %729 = vmatpush1.msra.mxu0 %v281
        %730 = vmatprep.subr.mxu0 0.0
        %731 = vmatpush2.msra.mxu0 0.0
        %732 = vmatprep.subr.mxu0 0.0
        %733 = vmatpush2.msra.mxu0 0.0
        %734 = vmatprep.subr.mxu0 0.0
        %735 = vmatpush2.msra.mxu0 0.0
        %736 = vmatprep.subr.mxu0 0.0
        %737 = vmatpush2.msra.mxu0 0.0
        %738 = vmatprep.subr.mxu0 0.0
        %739 = vmatpush2.msra.mxu0 0.0
        %740 = vmatprep.subr.mxu0 0.0
        %741 = vmatpush2.msra.mxu0 0.0
        %742 = vmatprep.subr.mxu0 0.0
        %743 = vmatpush2.msra.mxu0 0.0
        %744 = vmatprep.subr.mxu0 0.0
        %745 = vmatpush2.msra.mxu0 0.0
        %746 = vmatprep.subr.mxu0 0.0
        %747 = vmatpush2.msra.mxu0 0.0
        %748 = vmatprep.subr.mxu0 0.0
        %749 = vmatpush2.msra.mxu0 0.0
        %750 = vmatprep.subr.mxu0 0.0
        %751 = vmatpush2.msra.mxu0 0.0
        %752 = vmatprep.subr.mxu0 0.0
        %753 = vmatpush2.msra.mxu0 0.0
        %754 = vmatprep.subr.mxu0 0.0
        %755 = vmatpush2.msra.mxu0 0.0
        %756 = vmatprep.subr.mxu0 0.0
        %757 = vmatpush2.msra.mxu0 0.0
        %758 = vmatprep.subr.mxu0 0.0
        %759 = vmatpush2.msra.mxu0 0.0
        %760 = vmatprep.subr.mxu0 0.0
        %761 = vmatpush2.msra.mxu0 0.0
        %762 = vmatprep.mubr.f32.mxu0 0.0
        %763 = vmatmul.mubr.f32.gmra.mxu0 %v690
        %v764 = vpop.f32.mrf.mxu0
        %v765 = vadd.f32 0.0, %v764
        %v766 = vpop.f32.mrf.mxu0
        %767 = vmatprep.mubr.f32.mxu0 0.0
        %768 = vmatmul.mubr.f32.gmra.mxu0 %v692
        %v769 = vpop.f32.mrf.mxu0
        %v770 = vadd.f32 0.0, %v769
        %v771 = vpop.f32.mrf.mxu0
        %772 = vmatprep.mubr.f32.mxu0 0.0
        %773 = vmatmul.mubr.f32.gmra.mxu0 %v694
        %v774 = vpop.f32.mrf.mxu0
        %v775 = vadd.f32 0.0, %v774
        %v776 = vpop.f32.mrf.mxu0
        %777 = vmatprep.mubr.f32.mxu0 0.0
        %778 = vmatmul.mubr.f32.gmra.mxu0 %v696
        %v779 = vpop.f32.mrf.mxu0
        %v780 = vadd.f32 0.0, %v779
        %v781 = vpop.f32.mrf.mxu0
        %782 = vdwg.mxu0
        %787 = vrot.lane.b32.xlu0 %v563, 32
        %v788 = vpop.permute.xlu0 %787
        %789 = vrot.lane.b32.xlu0 %v568, 32
        %v790 = vpop.permute.xlu0 %789
        %791 = vrot.lane.b32.xlu0 %v573, 32
        %v792 = vpop.permute.xlu0 %791
        %793 = vrot.lane.b32.xlu0 %v578, 32
        %v794 = vpop.permute.xlu0 %793
        %803 = vrot.lane.b32.xlu0 %v664, 64
        %v804 = vpop.permute.xlu0 %803
        %805 = vrot.lane.b32.xlu0 %v669, 64
        %v806 = vpop.permute.xlu0 %805
        %807 = vrot.lane.b32.xlu0 %v674, 64
        %v808 = vpop.permute.xlu0 %807
        %809 = vrot.lane.b32.xlu0 %v679, 64
        %v810 = vpop.permute.xlu0 %809
        %819 = vrot.lane.b32.xlu0 %v765, 96
        %v820 = vpop.permute.xlu0 %819
        %821 = vrot.lane.b32.xlu0 %v770, 96
        %v822 = vpop.permute.xlu0 %821
        %823 = vrot.lane.b32.xlu0 %v775, 96
        %v824 = vpop.permute.xlu0 %823
        %825 = vrot.lane.b32.xlu0 %v780, 96
        %v826 = vpop.permute.xlu0 %825
        %v831 = vsel %vm285, %v462, %v788
        %v832 = vsel %vm285, %v467, %v790
        %v833 = vsel %vm285, %v472, %v792
        %v834 = vsel %vm285, %v477, %v794
        %vm835 = vcmask 523264
        %v836 = vsel %vm835, %v831, %v804
        %v837 = vsel %vm835, %v832, %v806
        %v838 = vsel %vm835, %v833, %v808
        %v839 = vsel %vm835, %v834, %v810
        %vm840 = vcmask 785408
        %v841 = vsel %vm840, %v836, %v820
        %v842 = vsel %vm840, %v837, %v822
        %v843 = vsel %vm840, %v838, %v824
        %v844 = vsel %vm840, %v839, %v826
        %v845 = vsub.f32 %v841, %v258
        %v846 = vsub.f32 %v842, %v259
        %v847 = vsub.f32 %v843, %v260
        %v848 = vsub.f32 %v844, %v261
        %v849 = vstv %s263
        %v850 = vmul.f32 %v849, %v845
        %v851 = vmul.f32 %v849, %v846
        %v852 = vmul.f32 %v849, %v847
        %v853 = vmul.f32 %v849, %v848
        %v854 = vadd.f32 %v841, %v850
        %v855 = vadd.f32 %v842, %v851
        %v856 = vadd.f32 %v843, %v852
        %v857 = vadd.f32 %v844, %v853
        %s858 = sld [smem:[#allocation3 + $0x1]]
        %s859 = sld [smem:[#allocation4 + $0x1]]
        %v860 = vsub.f32 %v854, %v258
        %v861 = vsub.f32 %v855, %v259
        %v862 = vsub.f32 %v856, %v260
        %v863 = vsub.f32 %v857, %v261
        %v864 = vstv %s858
        %v865 = vmul.f32 %v864, %v860
        %v866 = vmul.f32 %v864, %v861
        %v867 = vmul.f32 %v864, %v862
        %v868 = vmul.f32 %v864, %v863
        %v869 = vsub.f32 %v854, %v865
        %v870 = vsub.f32 %v855, %v866
        %v871 = vsub.f32 %v856, %v867
        %v872 = vsub.f32 %v857, %v868
        %s873 = scalar_lea.vmem %s3, 32
        %v874 = vld [vmem:[%s873] sm:$0xff]
        %v875 = vld [vmem:[%s873 + $0x8] sm:$0xff]
        %v876 = vld [vmem:[%s873 + $0x10] sm:$0xff]
        %v877 = vld [vmem:[%s873 + $0x18] sm:$0xff]
        %s878 = scalar_lea.vmem %s4, 32
        %v879 = vld [vmem:[%s878] sm:$0xff]
        %v880 = vld [vmem:[%s878 + $0x8] sm:$0xff]
        %v881 = vld [vmem:[%s878 + $0x10] sm:$0xff]
        %v882 = vld [vmem:[%s878 + $0x18] sm:$0xff]
        %v884 = vsel %vm285, %v874, 0
        %v887 = vsel %vm285, %v875, 0
        %v890 = vsel %vm285, %v876, 0
        %v893 = vsel %vm285, %v877, 0
        %895 = vmatprep.subr.mxu0 0.0
        %896 = vmatpush1.msra.mxu0 0.0
        %897 = vmatprep.subr.mxu0 0.0
        %898 = vmatpush1.msra.mxu0 0.0
        %899 = vmatprep.subr.mxu0 0.0
        %900 = vmatpush1.msra.mxu0 0.0
        %901 = vmatprep.subr.mxu0 0.0
        %902 = vmatpush1.msra.mxu0 0.0
        %903 = vmatprep.subr.mxu0 0.0
        %904 = vmatpush1.msra.mxu0 0.0
        %905 = vmatprep.subr.mxu0 0.0
        %906 = vmatpush1.msra.mxu0 0.0
        %907 = vmatprep.subr.mxu0 0.0
        %908 = vmatpush1.msra.mxu0 0.0
        %909 = vmatprep.subr.mxu0 0.0
        %910 = vmatpush1.msra.mxu0 0.0
        %911 = vmatprep.subr.mxu0 0.0
        %912 = vmatpush1.msra.mxu0 0.0
        %913 = vmatprep.subr.mxu0 0.0
        %914 = vmatpush1.msra.mxu0 0.0
        %915 = vmatprep.subr.mxu0 0.0
        %916 = vmatpush1.msra.mxu0 0.0
        %917 = vmatprep.subr.mxu0 0.0
        %918 = vmatpush1.msra.mxu0 0.0
        %919 = vmatprep.subr.mxu0 0.0
        %920 = vmatpush1.msra.mxu0 %v872
        %921 = vmatprep.subr.mxu0 0.0
        %922 = vmatpush1.msra.mxu0 %v871
        %923 = vmatprep.subr.mxu0 0.0
        %924 = vmatpush1.msra.mxu0 %v870
        %925 = vmatprep.subr.mxu0 0.0
        %926 = vmatpush1.msra.mxu0 %v869
        %927 = vmatprep.subr.mxu0 0.0
        %928 = vmatpush2.msra.mxu0 0.0
        %929 = vmatprep.subr.mxu0 0.0
        %930 = vmatpush2.msra.mxu0 0.0
        %931 = vmatprep.subr.mxu0 0.0
        %932 = vmatpush2.msra.mxu0 0.0
        %933 = vmatprep.subr.mxu0 0.0
        %934 = vmatpush2.msra.mxu0 0.0
        %935 = vmatprep.subr.mxu0 0.0
        %936 = vmatpush2.msra.mxu0 0.0
        %937 = vmatprep.subr.mxu0 0.0
        %938 = vmatpush2.msra.mxu0 0.0
        %939 = vmatprep.subr.mxu0 0.0
        %940 = vmatpush2.msra.mxu0 0.0
        %941 = vmatprep.subr.mxu0 0.0
        %942 = vmatpush2.msra.mxu0 0.0
        %943 = vmatprep.subr.mxu0 0.0
        %944 = vmatpush2.msra.mxu0 0.0
        %945 = vmatprep.subr.mxu0 0.0
        %946 = vmatpush2.msra.mxu0 0.0
        %947 = vmatprep.subr.mxu0 0.0
        %948 = vmatpush2.msra.mxu0 0.0
        %949 = vmatprep.subr.mxu0 0.0
        %950 = vmatpush2.msra.mxu0 0.0
        %951 = vmatprep.subr.mxu0 0.0
        %952 = vmatpush2.msra.mxu0 0.0
        %953 = vmatprep.subr.mxu0 0.0
        %954 = vmatpush2.msra.mxu0 0.0
        %955 = vmatprep.subr.mxu0 0.0
        %956 = vmatpush2.msra.mxu0 0.0
        %957 = vmatprep.subr.mxu0 0.0
        %958 = vmatpush2.msra.mxu0 0.0
        %959 = vmatprep.mubr.f32.mxu0 0.0
        %960 = vmatmul.mubr.f32.gmra.mxu0 %v884
        %v961 = vpop.f32.mrf.mxu0
        %v962 = vadd.f32 0.0, %v961
        %v963 = vpop.f32.mrf.mxu0
        %964 = vmatprep.mubr.f32.mxu0 0.0
        %965 = vmatmul.mubr.f32.gmra.mxu0 %v887
        %v966 = vpop.f32.mrf.mxu0
        %v967 = vadd.f32 0.0, %v966
        %v968 = vpop.f32.mrf.mxu0
        %969 = vmatprep.mubr.f32.mxu0 0.0
        %970 = vmatmul.mubr.f32.gmra.mxu0 %v890
        %v971 = vpop.f32.mrf.mxu0
        %v972 = vadd.f32 0.0, %v971
        %v973 = vpop.f32.mrf.mxu0
        %974 = vmatprep.mubr.f32.mxu0 0.0
        %975 = vmatmul.mubr.f32.gmra.mxu0 %v893
        %v976 = vpop.f32.mrf.mxu0
        %v977 = vadd.f32 0.0, %v976
        %v978 = vpop.f32.mrf.mxu0
        %979 = vdwg.mxu0
        %v981 = vsel %vm285, %v962, 0
        %v984 = vsel %vm285, %v967, 0
        %v987 = vsel %vm285, %v972, 0
        %v990 = vsel %vm285, %v977, 0
        %992 = vmatprep.subr.mxu0 0.0
        %993 = vmatpush1.msra.mxu0 0.0
        %994 = vmatprep.subr.mxu0 0.0
        %995 = vmatpush1.msra.mxu0 0.0
        %996 = vmatprep.subr.mxu0 0.0
        %997 = vmatpush1.msra.mxu0 0.0
        %998 = vmatprep.subr.mxu0 0.0
        %999 = vmatpush1.msra.mxu0 0.0
        %1000 = vmatprep.subr.mxu0 0.0
        %1001 = vmatpush1.msra.mxu0 0.0
        %1002 = vmatprep.subr.mxu0 0.0
        %1003 = vmatpush1.msra.mxu0 0.0
        %1004 = vmatprep.subr.mxu0 0.0
        %1005 = vmatpush1.msra.mxu0 0.0
        %1006 = vmatprep.subr.mxu0 0.0
        %1007 = vmatpush1.msra.mxu0 0.0
        %1008 = vmatprep.subr.mxu0 0.0
        %1009 = vmatpush1.msra.mxu0 0.0
        %1010 = vmatprep.subr.mxu0 0.0
        %1011 = vmatpush1.msra.mxu0 0.0
        %1012 = vmatprep.subr.mxu0 0.0
        %1013 = vmatpush1.msra.mxu0 0.0
        %1014 = vmatprep.subr.mxu0 0.0
        %1015 = vmatpush1.msra.mxu0 0.0
        %1016 = vmatprep.subr.mxu0 0.0
        %1017 = vmatpush1.msra.mxu0 %v882
        %1018 = vmatprep.subr.mxu0 0.0
        %1019 = vmatpush1.msra.mxu0 %v881
        %1020 = vmatprep.subr.mxu0 0.0
        %1021 = vmatpush1.msra.mxu0 %v880
        %1022 = vmatprep.subr.mxu0 0.0
        %1023 = vmatpush1.msra.mxu0 %v879
        %1024 = vmatprep.subr.mxu0 0.0
        %1025 = vmatpush2.msra.mxu0 0.0
        %1026 = vmatprep.subr.mxu0 0.0
        %1027 = vmatpush2.msra.mxu0 0.0
        %1028 = vmatprep.subr.mxu0 0.0
        %1029 = vmatpush2.msra.mxu0 0.0
        %1030 = vmatprep.subr.mxu0 0.0
        %1031 = vmatpush2.msra.mxu0 0.0
        %1032 = vmatprep.subr.mxu0 0.0
        %1033 = vmatpush2.msra.mxu0 0.0
        %1034 = vmatprep.subr.mxu0 0.0
        %1035 = vmatpush2.msra.mxu0 0.0
        %1036 = vmatprep.subr.mxu0 0.0
        %1037 = vmatpush2.msra.mxu0 0.0
        %1038 = vmatprep.subr.mxu0 0.0
        %1039 = vmatpush2.msra.mxu0 0.0
        %1040 = vmatprep.subr.mxu0 0.0
        %1041 = vmatpush2.msra.mxu0 0.0
        %1042 = vmatprep.subr.mxu0 0.0
        %1043 = vmatpush2.msra.mxu0 0.0
        %1044 = vmatprep.subr.mxu0 0.0
        %1045 = vmatpush2.msra.mxu0 0.0
        %1046 = vmatprep.subr.mxu0 0.0
        %1047 = vmatpush2.msra.mxu0 0.0
        %1048 = vmatprep.subr.mxu0 0.0
        %1049 = vmatpush2.msra.mxu0 0.0
        %1050 = vmatprep.subr.mxu0 0.0
        %1051 = vmatpush2.msra.mxu0 0.0
        %1052 = vmatprep.subr.mxu0 0.0
        %1053 = vmatpush2.msra.mxu0 0.0
        %1054 = vmatprep.subr.mxu0 0.0
        %1055 = vmatpush2.msra.mxu0 0.0
        %1056 = vmatprep.mubr.f32.mxu0 0.0
        %1057 = vmatmul.mubr.f32.gmra.mxu0 %v981
        %v1058 = vpop.f32.mrf.mxu0
        %v1059 = vadd.f32 0.0, %v1058
        %v1060 = vpop.f32.mrf.mxu0
        %1061 = vmatprep.mubr.f32.mxu0 0.0
        %1062 = vmatmul.mubr.f32.gmra.mxu0 %v984
        %v1063 = vpop.f32.mrf.mxu0
        %v1064 = vadd.f32 0.0, %v1063
        %v1065 = vpop.f32.mrf.mxu0
        %1066 = vmatprep.mubr.f32.mxu0 0.0
        %1067 = vmatmul.mubr.f32.gmra.mxu0 %v987
        %v1068 = vpop.f32.mrf.mxu0
        %v1069 = vadd.f32 0.0, %v1068
        %v1070 = vpop.f32.mrf.mxu0
        %1071 = vmatprep.mubr.f32.mxu0 0.0
        %1072 = vmatmul.mubr.f32.gmra.mxu0 %v990
        %v1073 = vpop.f32.mrf.mxu0
        %v1074 = vadd.f32 0.0, %v1073
        %v1075 = vpop.f32.mrf.mxu0
        %1076 = vdwg.mxu0
        %1077 = vrot.lane.b32.xlu0 %v962, 96
        %v1078 = vpop.permute.xlu0 %1077
        %1079 = vrot.lane.b32.xlu0 %v967, 96
        %v1080 = vpop.permute.xlu0 %1079
        %1081 = vrot.lane.b32.xlu0 %v972, 96
        %v1082 = vpop.permute.xlu0 %1081
        %1083 = vrot.lane.b32.xlu0 %v977, 96
        %v1084 = vpop.permute.xlu0 %1083
        %v1085 = vsel %vm285, %v1078, 0
        %v1087 = vsel %vm285, %v1080, 0
        %v1089 = vsel %vm285, %v1082, 0
        %v1091 = vsel %vm285, %v1084, 0
        %1093 = vmatprep.subr.mxu0 0.0
        %1094 = vmatpush1.msra.mxu0 0.0
        %1095 = vmatprep.subr.mxu0 0.0
        %1096 = vmatpush1.msra.mxu0 0.0
        %1097 = vmatprep.subr.mxu0 0.0
        %1098 = vmatpush1.msra.mxu0 0.0
        %1099 = vmatprep.subr.mxu0 0.0
        %1100 = vmatpush1.msra.mxu0 0.0
        %1101 = vmatprep.subr.mxu0 0.0
        %1102 = vmatpush1.msra.mxu0 0.0
        %1103 = vmatprep.subr.mxu0 0.0
        %1104 = vmatpush1.msra.mxu0 0.0
        %1105 = vmatprep.subr.mxu0 0.0
        %1106 = vmatpush1.msra.mxu0 0.0
        %1107 = vmatprep.subr.mxu0 0.0
        %1108 = vmatpush1.msra.mxu0 0.0
        %1109 = vmatprep.subr.mxu0 0.0
        %1110 = vmatpush1.msra.mxu0 0.0
        %1111 = vmatprep.subr.mxu0 0.0
        %1112 = vmatpush1.msra.mxu0 0.0
        %1113 = vmatprep.subr.mxu0 0.0
        %1114 = vmatpush1.msra.mxu0 0.0
        %1115 = vmatprep.subr.mxu0 0.0
        %1116 = vmatpush1.msra.mxu0 0.0
        %1117 = vmatprep.subr.mxu0 0.0
        %1118 = vmatpush1.msra.mxu0 %v882
        %1119 = vmatprep.subr.mxu0 0.0
        %1120 = vmatpush1.msra.mxu0 %v881
        %1121 = vmatprep.subr.mxu0 0.0
        %1122 = vmatpush1.msra.mxu0 %v880
        %1123 = vmatprep.subr.mxu0 0.0
        %1124 = vmatpush1.msra.mxu0 %v879
        %1125 = vmatprep.subr.mxu0 0.0
        %1126 = vmatpush2.msra.mxu0 0.0
        %1127 = vmatprep.subr.mxu0 0.0
        %1128 = vmatpush2.msra.mxu0 0.0
        %1129 = vmatprep.subr.mxu0 0.0
        %1130 = vmatpush2.msra.mxu0 0.0
        %1131 = vmatprep.subr.mxu0 0.0
        %1132 = vmatpush2.msra.mxu0 0.0
        %1133 = vmatprep.subr.mxu0 0.0
        %1134 = vmatpush2.msra.mxu0 0.0
        %1135 = vmatprep.subr.mxu0 0.0
        %1136 = vmatpush2.msra.mxu0 0.0
        %1137 = vmatprep.subr.mxu0 0.0
        %1138 = vmatpush2.msra.mxu0 0.0
        %1139 = vmatprep.subr.mxu0 0.0
        %1140 = vmatpush2.msra.mxu0 0.0
        %1141 = vmatprep.subr.mxu0 0.0
        %1142 = vmatpush2.msra.mxu0 0.0
        %1143 = vmatprep.subr.mxu0 0.0
        %1144 = vmatpush2.msra.mxu0 0.0
        %1145 = vmatprep.subr.mxu0 0.0
        %1146 = vmatpush2.msra.mxu0 0.0
        %1147 = vmatprep.subr.mxu0 0.0
        %1148 = vmatpush2.msra.mxu0 0.0
        %1149 = vmatprep.subr.mxu0 0.0
        %1150 = vmatpush2.msra.mxu0 0.0
        %1151 = vmatprep.subr.mxu0 0.0
        %1152 = vmatpush2.msra.mxu0 0.0
        %1153 = vmatprep.subr.mxu0 0.0
        %1154 = vmatpush2.msra.mxu0 0.0
        %1155 = vmatprep.subr.mxu0 0.0
        %1156 = vmatpush2.msra.mxu0 0.0
        %1157 = vmatprep.mubr.f32.mxu0 0.0
        %1158 = vmatmul.mubr.f32.gmra.mxu0 %v1085
        %v1159 = vpop.f32.mrf.mxu0
        %v1160 = vadd.f32 0.0, %v1159
        %v1161 = vpop.f32.mrf.mxu0
        %1162 = vmatprep.mubr.f32.mxu0 0.0
        %1163 = vmatmul.mubr.f32.gmra.mxu0 %v1087
        %v1164 = vpop.f32.mrf.mxu0
        %v1165 = vadd.f32 0.0, %v1164
        %v1166 = vpop.f32.mrf.mxu0
        %1167 = vmatprep.mubr.f32.mxu0 0.0
        %1168 = vmatmul.mubr.f32.gmra.mxu0 %v1089
        %v1169 = vpop.f32.mrf.mxu0
        %v1170 = vadd.f32 0.0, %v1169
        %v1171 = vpop.f32.mrf.mxu0
        %1172 = vmatprep.mubr.f32.mxu0 0.0
        %1173 = vmatmul.mubr.f32.gmra.mxu0 %v1091
        %v1174 = vpop.f32.mrf.mxu0
        %v1175 = vadd.f32 0.0, %v1174
        %v1176 = vpop.f32.mrf.mxu0
        %1177 = vdwg.mxu0
        %1178 = vrot.lane.b32.xlu0 %v962, 64
        %v1179 = vpop.permute.xlu0 %1178
        %1180 = vrot.lane.b32.xlu0 %v967, 64
        %v1181 = vpop.permute.xlu0 %1180
        %1182 = vrot.lane.b32.xlu0 %v972, 64
        %v1183 = vpop.permute.xlu0 %1182
        %1184 = vrot.lane.b32.xlu0 %v977, 64
        %v1185 = vpop.permute.xlu0 %1184
        %v1186 = vsel %vm285, %v1179, 0
        %v1188 = vsel %vm285, %v1181, 0
        %v1190 = vsel %vm285, %v1183, 0
        %v1192 = vsel %vm285, %v1185, 0
        %1194 = vmatprep.subr.mxu0 0.0
        %1195 = vmatpush1.msra.mxu0 0.0
        %1196 = vmatprep.subr.mxu0 0.0
        %1197 = vmatpush1.msra.mxu0 0.0
        %1198 = vmatprep.subr.mxu0 0.0
        %1199 = vmatpush1.msra.mxu0 0.0
        %1200 = vmatprep.subr.mxu0 0.0
        %1201 = vmatpush1.msra.mxu0 0.0
        %1202 = vmatprep.subr.mxu0 0.0
        %1203 = vmatpush1.msra.mxu0 0.0
        %1204 = vmatprep.subr.mxu0 0.0
        %1205 = vmatpush1.msra.mxu0 0.0
        %1206 = vmatprep.subr.mxu0 0.0
        %1207 = vmatpush1.msra.mxu0 0.0
        %1208 = vmatprep.subr.mxu0 0.0
        %1209 = vmatpush1.msra.mxu0 0.0
        %1210 = vmatprep.subr.mxu0 0.0
        %1211 = vmatpush1.msra.mxu0 0.0
        %1212 = vmatprep.subr.mxu0 0.0
        %1213 = vmatpush1.msra.mxu0 0.0
        %1214 = vmatprep.subr.mxu0 0.0
        %1215 = vmatpush1.msra.mxu0 0.0
        %1216 = vmatprep.subr.mxu0 0.0
        %1217 = vmatpush1.msra.mxu0 0.0
        %1218 = vmatprep.subr.mxu0 0.0
        %1219 = vmatpush1.msra.mxu0 %v882
        %1220 = vmatprep.subr.mxu0 0.0
        %1221 = vmatpush1.msra.mxu0 %v881
        %1222 = vmatprep.subr.mxu0 0.0
        %1223 = vmatpush1.msra.mxu0 %v880
        %1224 = vmatprep.subr.mxu0 0.0
        %1225 = vmatpush1.msra.mxu0 %v879
        %1226 = vmatprep.subr.mxu0 0.0
        %1227 = vmatpush2.msra.mxu0 0.0
        %1228 = vmatprep.subr.mxu0 0.0
        %1229 = vmatpush2.msra.mxu0 0.0
        %1230 = vmatprep.subr.mxu0 0.0
        %1231 = vmatpush2.msra.mxu0 0.0
        %1232 = vmatprep.subr.mxu0 0.0
        %1233 = vmatpush2.msra.mxu0 0.0
        %1234 = vmatprep.subr.mxu0 0.0
        %1235 = vmatpush2.msra.mxu0 0.0
        %1236 = vmatprep.subr.mxu0 0.0
        %1237 = vmatpush2.msra.mxu0 0.0
        %1238 = vmatprep.subr.mxu0 0.0
        %1239 = vmatpush2.msra.mxu0 0.0
        %1240 = vmatprep.subr.mxu0 0.0
        %1241 = vmatpush2.msra.mxu0 0.0
        %1242 = vmatprep.subr.mxu0 0.0
        %1243 = vmatpush2.msra.mxu0 0.0
        %1244 = vmatprep.subr.mxu0 0.0
        %1245 = vmatpush2.msra.mxu0 0.0
        %1246 = vmatprep.subr.mxu0 0.0
        %1247 = vmatpush2.msra.mxu0 0.0
        %1248 = vmatprep.subr.mxu0 0.0
        %1249 = vmatpush2.msra.mxu0 0.0
        %1250 = vmatprep.subr.mxu0 0.0
        %1251 = vmatpush2.msra.mxu0 0.0
        %1252 = vmatprep.subr.mxu0 0.0
        %1253 = vmatpush2.msra.mxu0 0.0
        %1254 = vmatprep.subr.mxu0 0.0
        %1255 = vmatpush2.msra.mxu0 0.0
        %1256 = vmatprep.subr.mxu0 0.0
        %1257 = vmatpush2.msra.mxu0 0.0
        %1258 = vmatprep.mubr.f32.mxu0 0.0
        %1259 = vmatmul.mubr.f32.gmra.mxu0 %v1186
        %v1260 = vpop.f32.mrf.mxu0
        %v1261 = vadd.f32 0.0, %v1260
        %v1262 = vpop.f32.mrf.mxu0
        %1263 = vmatprep.mubr.f32.mxu0 0.0
        %1264 = vmatmul.mubr.f32.gmra.mxu0 %v1188
        %v1265 = vpop.f32.mrf.mxu0
        %v1266 = vadd.f32 0.0, %v1265
        %v1267 = vpop.f32.mrf.mxu0
        %1268 = vmatprep.mubr.f32.mxu0 0.0
        %1269 = vmatmul.mubr.f32.gmra.mxu0 %v1190
        %v1270 = vpop.f32.mrf.mxu0
        %v1271 = vadd.f32 0.0, %v1270
        %v1272 = vpop.f32.mrf.mxu0
        %1273 = vmatprep.mubr.f32.mxu0 0.0
        %1274 = vmatmul.mubr.f32.gmra.mxu0 %v1192
        %v1275 = vpop.f32.mrf.mxu0
        %v1276 = vadd.f32 0.0, %v1275
        %v1277 = vpop.f32.mrf.mxu0
        %1278 = vdwg.mxu0
        %1279 = vrot.lane.b32.xlu0 %v962, 32
        %v1280 = vpop.permute.xlu0 %1279
        %1281 = vrot.lane.b32.xlu0 %v967, 32
        %v1282 = vpop.permute.xlu0 %1281
        %1283 = vrot.lane.b32.xlu0 %v972, 32
        %v1284 = vpop.permute.xlu0 %1283
        %1285 = vrot.lane.b32.xlu0 %v977, 32
        %v1286 = vpop.permute.xlu0 %1285
        %v1287 = vsel %vm285, %v1280, 0
        %v1289 = vsel %vm285, %v1282, 0
        %v1291 = vsel %vm285, %v1284, 0
        %v1293 = vsel %vm285, %v1286, 0
        %1295 = vmatprep.subr.mxu0 0.0
        %1296 = vmatpush1.msra.mxu0 0.0
        %1297 = vmatprep.subr.mxu0 0.0
        %1298 = vmatpush1.msra.mxu0 0.0
        %1299 = vmatprep.subr.mxu0 0.0
        %1300 = vmatpush1.msra.mxu0 0.0
        %1301 = vmatprep.subr.mxu0 0.0
        %1302 = vmatpush1.msra.mxu0 0.0
        %1303 = vmatprep.subr.mxu0 0.0
        %1304 = vmatpush1.msra.mxu0 0.0
        %1305 = vmatprep.subr.mxu0 0.0
        %1306 = vmatpush1.msra.mxu0 0.0
        %1307 = vmatprep.subr.mxu0 0.0
        %1308 = vmatpush1.msra.mxu0 0.0
        %1309 = vmatprep.subr.mxu0 0.0
        %1310 = vmatpush1.msra.mxu0 0.0
        %1311 = vmatprep.subr.mxu0 0.0
        %1312 = vmatpush1.msra.mxu0 0.0
        %1313 = vmatprep.subr.mxu0 0.0
        %1314 = vmatpush1.msra.mxu0 0.0
        %1315 = vmatprep.subr.mxu0 0.0
        %1316 = vmatpush1.msra.mxu0 0.0
        %1317 = vmatprep.subr.mxu0 0.0
        %1318 = vmatpush1.msra.mxu0 0.0
        %1319 = vmatprep.subr.mxu0 0.0
        %1320 = vmatpush1.msra.mxu0 %v882
        %1321 = vmatprep.subr.mxu0 0.0
        %1322 = vmatpush1.msra.mxu0 %v881
        %1323 = vmatprep.subr.mxu0 0.0
        %1324 = vmatpush1.msra.mxu0 %v880
        %1325 = vmatprep.subr.mxu0 0.0
        %1326 = vmatpush1.msra.mxu0 %v879
        %1327 = vmatprep.subr.mxu0 0.0
        %1328 = vmatpush2.msra.mxu0 0.0
        %1329 = vmatprep.subr.mxu0 0.0
        %1330 = vmatpush2.msra.mxu0 0.0
        %1331 = vmatprep.subr.mxu0 0.0
        %1332 = vmatpush2.msra.mxu0 0.0
        %1333 = vmatprep.subr.mxu0 0.0
        %1334 = vmatpush2.msra.mxu0 0.0
        %1335 = vmatprep.subr.mxu0 0.0
        %1336 = vmatpush2.msra.mxu0 0.0
        %1337 = vmatprep.subr.mxu0 0.0
        %1338 = vmatpush2.msra.mxu0 0.0
        %1339 = vmatprep.subr.mxu0 0.0
        %1340 = vmatpush2.msra.mxu0 0.0
        %1341 = vmatprep.subr.mxu0 0.0
        %1342 = vmatpush2.msra.mxu0 0.0
        %1343 = vmatprep.subr.mxu0 0.0
        %1344 = vmatpush2.msra.mxu0 0.0
        %1345 = vmatprep.subr.mxu0 0.0
        %1346 = vmatpush2.msra.mxu0 0.0
        %1347 = vmatprep.subr.mxu0 0.0
        %1348 = vmatpush2.msra.mxu0 0.0
        %1349 = vmatprep.subr.mxu0 0.0
        %1350 = vmatpush2.msra.mxu0 0.0
        %1351 = vmatprep.subr.mxu0 0.0
        %1352 = vmatpush2.msra.mxu0 0.0
        %1353 = vmatprep.subr.mxu0 0.0
        %1354 = vmatpush2.msra.mxu0 0.0
        %1355 = vmatprep.subr.mxu0 0.0
        %1356 = vmatpush2.msra.mxu0 0.0
        %1357 = vmatprep.subr.mxu0 0.0
        %1358 = vmatpush2.msra.mxu0 0.0
        %1359 = vmatprep.mubr.f32.mxu0 0.0
        %1360 = vmatmul.mubr.f32.gmra.mxu0 %v1287
        %v1361 = vpop.f32.mrf.mxu0
        %v1362 = vadd.f32 0.0, %v1361
        %v1363 = vpop.f32.mrf.mxu0
        %1364 = vmatprep.mubr.f32.mxu0 0.0
        %1365 = vmatmul.mubr.f32.gmra.mxu0 %v1289
        %v1366 = vpop.f32.mrf.mxu0
        %v1367 = vadd.f32 0.0, %v1366
        %v1368 = vpop.f32.mrf.mxu0
        %1369 = vmatprep.mubr.f32.mxu0 0.0
        %1370 = vmatmul.mubr.f32.gmra.mxu0 %v1291
        %v1371 = vpop.f32.mrf.mxu0
        %v1372 = vadd.f32 0.0, %v1371
        %v1373 = vpop.f32.mrf.mxu0
        %1374 = vmatprep.mubr.f32.mxu0 0.0
        %1375 = vmatmul.mubr.f32.gmra.mxu0 %v1293
        %v1376 = vpop.f32.mrf.mxu0
        %v1377 = vadd.f32 0.0, %v1376
        %v1378 = vpop.f32.mrf.mxu0
        %1379 = vdwg.mxu0
        %1384 = vrot.lane.b32.xlu0 %v1160, 32
        %v1385 = vpop.permute.xlu0 %1384
        %1386 = vrot.lane.b32.xlu0 %v1165, 32
        %v1387 = vpop.permute.xlu0 %1386
        %1388 = vrot.lane.b32.xlu0 %v1170, 32
        %v1389 = vpop.permute.xlu0 %1388
        %1390 = vrot.lane.b32.xlu0 %v1175, 32
        %v1391 = vpop.permute.xlu0 %1390
        %1400 = vrot.lane.b32.xlu0 %v1261, 64
        %v1401 = vpop.permute.xlu0 %1400
        %1402 = vrot.lane.b32.xlu0 %v1266, 64
        %v1403 = vpop.permute.xlu0 %1402
        %1404 = vrot.lane.b32.xlu0 %v1271, 64
        %v1405 = vpop.permute.xlu0 %1404
        %1406 = vrot.lane.b32.xlu0 %v1276, 64
        %v1407 = vpop.permute.xlu0 %1406
        %1416 = vrot.lane.b32.xlu0 %v1362, 96
        %v1417 = vpop.permute.xlu0 %1416
        %1418 = vrot.lane.b32.xlu0 %v1367, 96
        %v1419 = vpop.permute.xlu0 %1418
        %1420 = vrot.lane.b32.xlu0 %v1372, 96
        %v1421 = vpop.permute.xlu0 %1420
        %1422 = vrot.lane.b32.xlu0 %v1377, 96
        %v1423 = vpop.permute.xlu0 %1422
        %v1428 = vsel %vm285, %v1059, %v1385
        %v1429 = vsel %vm285, %v1064, %v1387
        %v1430 = vsel %vm285, %v1069, %v1389
        %v1431 = vsel %vm285, %v1074, %v1391
        %v1432 = vsel %vm835, %v1428, %v1401
        %v1433 = vsel %vm835, %v1429, %v1403
        %v1434 = vsel %vm835, %v1430, %v1405
        %v1435 = vsel %vm835, %v1431, %v1407
        %v1436 = vsel %vm840, %v1432, %v1417
        %v1437 = vsel %vm840, %v1433, %v1419
        %v1438 = vsel %vm840, %v1434, %v1421
        %v1439 = vsel %vm840, %v1435, %v1423
        %v1440 = vsub.f32 %v1436, %v841
        %v1441 = vsub.f32 %v1437, %v842
        %v1442 = vsub.f32 %v1438, %v843
        %v1443 = vsub.f32 %v1439, %v844
        %v1444 = vstv %s859
        %v1445 = vmul.f32 %v1444, %v1440
        %v1446 = vmul.f32 %v1444, %v1441
        %v1447 = vmul.f32 %v1444, %v1442
        %v1448 = vmul.f32 %v1444, %v1443
        %v1449 = vadd.f32 %v1436, %v1445
        %v1450 = vadd.f32 %v1437, %v1446
        %v1451 = vadd.f32 %v1438, %v1447
        %v1452 = vadd.f32 %v1439, %v1448
        %s1453 = sld [smem:[#allocation3 + $0x2]]
        %s1454 = sld [smem:[#allocation4 + $0x2]]
        %v1455 = vsub.f32 %v1449, %v258
        %v1456 = vsub.f32 %v1450, %v259
        %v1457 = vsub.f32 %v1451, %v260
        %v1458 = vsub.f32 %v1452, %v261
        %v1459 = vstv %s1453
        %v1460 = vmul.f32 %v1459, %v1455
        %v1461 = vmul.f32 %v1459, %v1456
        %v1462 = vmul.f32 %v1459, %v1457
        %v1463 = vmul.f32 %v1459, %v1458
        %v1464 = vsub.f32 %v1449, %v1460
        %v1465 = vsub.f32 %v1450, %v1461
        %v1466 = vsub.f32 %v1451, %v1462
        %v1467 = vsub.f32 %v1452, %v1463
        %s1468 = scalar_lea.vmem %s3, 64
        %v1469 = vld [vmem:[%s1468] sm:$0xff]
        %v1470 = vld [vmem:[%s1468 + $0x8] sm:$0xff]
        %v1471 = vld [vmem:[%s1468 + $0x10] sm:$0xff]
        %v1472 = vld [vmem:[%s1468 + $0x18] sm:$0xff]
        %s1473 = scalar_lea.vmem %s4, 64
        %v1474 = vld [vmem:[%s1473] sm:$0xff]
        %v1475 = vld [vmem:[%s1473 + $0x8] sm:$0xff]
        %v1476 = vld [vmem:[%s1473 + $0x10] sm:$0xff]
        %v1477 = vld [vmem:[%s1473 + $0x18] sm:$0xff]
        %v1479 = vsel %vm285, %v1469, 0
        %v1482 = vsel %vm285, %v1470, 0
        %v1485 = vsel %vm285, %v1471, 0
        %v1488 = vsel %vm285, %v1472, 0
        %1490 = vmatprep.subr.mxu0 0.0
        %1491 = vmatpush1.msra.mxu0 0.0
        %1492 = vmatprep.subr.mxu0 0.0
        %1493 = vmatpush1.msra.mxu0 0.0
        %1494 = vmatprep.subr.mxu0 0.0
        %1495 = vmatpush1.msra.mxu0 0.0
        %1496 = vmatprep.subr.mxu0 0.0
        %1497 = vmatpush1.msra.mxu0 0.0
        %1498 = vmatprep.subr.mxu0 0.0
        %1499 = vmatpush1.msra.mxu0 0.0
        %1500 = vmatprep.subr.mxu0 0.0
        %1501 = vmatpush1.msra.mxu0 0.0
        %1502 = vmatprep.subr.mxu0 0.0
        %1503 = vmatpush1.msra.mxu0 0.0
        %1504 = vmatprep.subr.mxu0 0.0
        %1505 = vmatpush1.msra.mxu0 0.0
        %1506 = vmatprep.subr.mxu0 0.0
        %1507 = vmatpush1.msra.mxu0 0.0
        %1508 = vmatprep.subr.mxu0 0.0
        %1509 = vmatpush1.msra.mxu0 0.0
        %1510 = vmatprep.subr.mxu0 0.0
        %1511 = vmatpush1.msra.mxu0 0.0
        %1512 = vmatprep.subr.mxu0 0.0
        %1513 = vmatpush1.msra.mxu0 0.0
        %1514 = vmatprep.subr.mxu0 0.0
        %1515 = vmatpush1.msra.mxu0 %v1467
        %1516 = vmatprep.subr.mxu0 0.0
        %1517 = vmatpush1.msra.mxu0 %v1466
        %1518 = vmatprep.subr.mxu0 0.0
        %1519 = vmatpush1.msra.mxu0 %v1465
        %1520 = vmatprep.subr.mxu0 0.0
        %1521 = vmatpush1.msra.mxu0 %v1464
        %1522 = vmatprep.subr.mxu0 0.0
        %1523 = vmatpush2.msra.mxu0 0.0
        %1524 = vmatprep.subr.mxu0 0.0
        %1525 = vmatpush2.msra.mxu0 0.0
        %1526 = vmatprep.subr.mxu0 0.0
        %1527 = vmatpush2.msra.mxu0 0.0
        %1528 = vmatprep.subr.mxu0 0.0
        %1529 = vmatpush2.msra.mxu0 0.0
        %1530 = vmatprep.subr.mxu0 0.0
        %1531 = vmatpush2.msra.mxu0 0.0
        %1532 = vmatprep.subr.mxu0 0.0
        %1533 = vmatpush2.msra.mxu0 0.0
        %1534 = vmatprep.subr.mxu0 0.0
        %1535 = vmatpush2.msra.mxu0 0.0
        %1536 = vmatprep.subr.mxu0 0.0
        %1537 = vmatpush2.msra.mxu0 0.0
        %1538 = vmatprep.subr.mxu0 0.0
        %1539 = vmatpush2.msra.mxu0 0.0
        %1540 = vmatprep.subr.mxu0 0.0
        %1541 = vmatpush2.msra.mxu0 0.0
        %1542 = vmatprep.subr.mxu0 0.0
        %1543 = vmatpush2.msra.mxu0 0.0
        %1544 = vmatprep.subr.mxu0 0.0
        %1545 = vmatpush2.msra.mxu0 0.0
        %1546 = vmatprep.subr.mxu0 0.0
        %1547 = vmatpush2.msra.mxu0 0.0
        %1548 = vmatprep.subr.mxu0 0.0
        %1549 = vmatpush2.msra.mxu0 0.0
        %1550 = vmatprep.subr.mxu0 0.0
        %1551 = vmatpush2.msra.mxu0 0.0
        %1552 = vmatprep.subr.mxu0 0.0
        %1553 = vmatpush2.msra.mxu0 0.0
        %1554 = vmatprep.mubr.f32.mxu0 0.0
        %1555 = vmatmul.mubr.f32.gmra.mxu0 %v1479
        %v1556 = vpop.f32.mrf.mxu0
        %v1557 = vadd.f32 0.0, %v1556
        %v1558 = vpop.f32.mrf.mxu0
        %1559 = vmatprep.mubr.f32.mxu0 0.0
        %1560 = vmatmul.mubr.f32.gmra.mxu0 %v1482
        %v1561 = vpop.f32.mrf.mxu0
        %v1562 = vadd.f32 0.0, %v1561
        %v1563 = vpop.f32.mrf.mxu0
        %1564 = vmatprep.mubr.f32.mxu0 0.0
        %1565 = vmatmul.mubr.f32.gmra.mxu0 %v1485
        %v1566 = vpop.f32.mrf.mxu0
        %v1567 = vadd.f32 0.0, %v1566
        %v1568 = vpop.f32.mrf.mxu0
        %1569 = vmatprep.mubr.f32.mxu0 0.0
        %1570 = vmatmul.mubr.f32.gmra.mxu0 %v1488
        %v1571 = vpop.f32.mrf.mxu0
        %v1572 = vadd.f32 0.0, %v1571
        %v1573 = vpop.f32.mrf.mxu0
        %1574 = vdwg.mxu0
        %v1576 = vsel %vm285, %v1557, 0
        %v1579 = vsel %vm285, %v1562, 0
        %v1582 = vsel %vm285, %v1567, 0
        %v1585 = vsel %vm285, %v1572, 0
        %1587 = vmatprep.subr.mxu0 0.0
        %1588 = vmatpush1.msra.mxu0 0.0
        %1589 = vmatprep.subr.mxu0 0.0
        %1590 = vmatpush1.msra.mxu0 0.0
        %1591 = vmatprep.subr.mxu0 0.0
        %1592 = vmatpush1.msra.mxu0 0.0
        %1593 = vmatprep.subr.mxu0 0.0
        %1594 = vmatpush1.msra.mxu0 0.0
        %1595 = vmatprep.subr.mxu0 0.0
        %1596 = vmatpush1.msra.mxu0 0.0
        %1597 = vmatprep.subr.mxu0 0.0
        %1598 = vmatpush1.msra.mxu0 0.0
        %1599 = vmatprep.subr.mxu0 0.0
        %1600 = vmatpush1.msra.mxu0 0.0
        %1601 = vmatprep.subr.mxu0 0.0
        %1602 = vmatpush1.msra.mxu0 0.0
        %1603 = vmatprep.subr.mxu0 0.0
        %1604 = vmatpush1.msra.mxu0 0.0
        %1605 = vmatprep.subr.mxu0 0.0
        %1606 = vmatpush1.msra.mxu0 0.0
        %1607 = vmatprep.subr.mxu0 0.0
        %1608 = vmatpush1.msra.mxu0 0.0
        %1609 = vmatprep.subr.mxu0 0.0
        %1610 = vmatpush1.msra.mxu0 0.0
        %1611 = vmatprep.subr.mxu0 0.0
        %1612 = vmatpush1.msra.mxu0 %v1477
        %1613 = vmatprep.subr.mxu0 0.0
        %1614 = vmatpush1.msra.mxu0 %v1476
        %1615 = vmatprep.subr.mxu0 0.0
        %1616 = vmatpush1.msra.mxu0 %v1475
        %1617 = vmatprep.subr.mxu0 0.0
        %1618 = vmatpush1.msra.mxu0 %v1474
        %1619 = vmatprep.subr.mxu0 0.0
        %1620 = vmatpush2.msra.mxu0 0.0
        %1621 = vmatprep.subr.mxu0 0.0
        %1622 = vmatpush2.msra.mxu0 0.0
        %1623 = vmatprep.subr.mxu0 0.0
        %1624 = vmatpush2.msra.mxu0 0.0
        %1625 = vmatprep.subr.mxu0 0.0
        %1626 = vmatpush2.msra.mxu0 0.0
        %1627 = vmatprep.subr.mxu0 0.0
        %1628 = vmatpush2.msra.mxu0 0.0
        %1629 = vmatprep.subr.mxu0 0.0
        %1630 = vmatpush2.msra.mxu0 0.0
        %1631 = vmatprep.subr.mxu0 0.0
        %1632 = vmatpush2.msra.mxu0 0.0
        %1633 = vmatprep.subr.mxu0 0.0
        %1634 = vmatpush2.msra.mxu0 0.0
        %1635 = vmatprep.subr.mxu0 0.0
        %1636 = vmatpush2.msra.mxu0 0.0
        %1637 = vmatprep.subr.mxu0 0.0
        %1638 = vmatpush2.msra.mxu0 0.0
        %1639 = vmatprep.subr.mxu0 0.0
        %1640 = vmatpush2.msra.mxu0 0.0
        %1641 = vmatprep.subr.mxu0 0.0
        %1642 = vmatpush2.msra.mxu0 0.0
        %1643 = vmatprep.subr.mxu0 0.0
        %1644 = vmatpush2.msra.mxu0 0.0
        %1645 = vmatprep.subr.mxu0 0.0
        %1646 = vmatpush2.msra.mxu0 0.0
        %1647 = vmatprep.subr.mxu0 0.0
        %1648 = vmatpush2.msra.mxu0 0.0
        %1649 = vmatprep.subr.mxu0 0.0
        %1650 = vmatpush2.msra.mxu0 0.0
        %1651 = vmatprep.mubr.f32.mxu0 0.0
        %1652 = vmatmul.mubr.f32.gmra.mxu0 %v1576
        %v1653 = vpop.f32.mrf.mxu0
        %v1654 = vadd.f32 0.0, %v1653
        %v1655 = vpop.f32.mrf.mxu0
        %1656 = vmatprep.mubr.f32.mxu0 0.0
        %1657 = vmatmul.mubr.f32.gmra.mxu0 %v1579
        %v1658 = vpop.f32.mrf.mxu0
        %v1659 = vadd.f32 0.0, %v1658
        %v1660 = vpop.f32.mrf.mxu0
        %1661 = vmatprep.mubr.f32.mxu0 0.0
        %1662 = vmatmul.mubr.f32.gmra.mxu0 %v1582
        %v1663 = vpop.f32.mrf.mxu0
        %v1664 = vadd.f32 0.0, %v1663
        %v1665 = vpop.f32.mrf.mxu0
        %1666 = vmatprep.mubr.f32.mxu0 0.0
        %1667 = vmatmul.mubr.f32.gmra.mxu0 %v1585
        %v1668 = vpop.f32.mrf.mxu0
        %v1669 = vadd.f32 0.0, %v1668
        %v1670 = vpop.f32.mrf.mxu0
        %1671 = vdwg.mxu0
        %1672 = vrot.lane.b32.xlu0 %v1557, 96
        %v1673 = vpop.permute.xlu0 %1672
        %1674 = vrot.lane.b32.xlu0 %v1562, 96
        %v1675 = vpop.permute.xlu0 %1674
        %1676 = vrot.lane.b32.xlu0 %v1567, 96
        %v1677 = vpop.permute.xlu0 %1676
        %1678 = vrot.lane.b32.xlu0 %v1572, 96
        %v1679 = vpop.permute.xlu0 %1678
        %v1680 = vsel %vm285, %v1673, 0
        %v1682 = vsel %vm285, %v1675, 0
        %v1684 = vsel %vm285, %v1677, 0
        %v1686 = vsel %vm285, %v1679, 0
        %1688 = vmatprep.subr.mxu0 0.0
        %1689 = vmatpush1.msra.mxu0 0.0
        %1690 = vmatprep.subr.mxu0 0.0
        %1691 = vmatpush1.msra.mxu0 0.0
        %1692 = vmatprep.subr.mxu0 0.0
        %1693 = vmatpush1.msra.mxu0 0.0
        %1694 = vmatprep.subr.mxu0 0.0
        %1695 = vmatpush1.msra.mxu0 0.0
        %1696 = vmatprep.subr.mxu0 0.0
        %1697 = vmatpush1.msra.mxu0 0.0
        %1698 = vmatprep.subr.mxu0 0.0
        %1699 = vmatpush1.msra.mxu0 0.0
        %1700 = vmatprep.subr.mxu0 0.0
        %1701 = vmatpush1.msra.mxu0 0.0
        %1702 = vmatprep.subr.mxu0 0.0
        %1703 = vmatpush1.msra.mxu0 0.0
        %1704 = vmatprep.subr.mxu0 0.0
        %1705 = vmatpush1.msra.mxu0 0.0
        %1706 = vmatprep.subr.mxu0 0.0
        %1707 = vmatpush1.msra.mxu0 0.0
        %1708 = vmatprep.subr.mxu0 0.0
        %1709 = vmatpush1.msra.mxu0 0.0
        %1710 = vmatprep.subr.mxu0 0.0
        %1711 = vmatpush1.msra.mxu0 0.0
        %1712 = vmatprep.subr.mxu0 0.0
        %1713 = vmatpush1.msra.mxu0 %v1477
        %1714 = vmatprep.subr.mxu0 0.0
        %1715 = vmatpush1.msra.mxu0 %v1476
        %1716 = vmatprep.subr.mxu0 0.0
        %1717 = vmatpush1.msra.mxu0 %v1475
        %1718 = vmatprep.subr.mxu0 0.0
        %1719 = vmatpush1.msra.mxu0 %v1474
        %1720 = vmatprep.subr.mxu0 0.0
        %1721 = vmatpush2.msra.mxu0 0.0
        %1722 = vmatprep.subr.mxu0 0.0
        %1723 = vmatpush2.msra.mxu0 0.0
        %1724 = vmatprep.subr.mxu0 0.0
        %1725 = vmatpush2.msra.mxu0 0.0
        %1726 = vmatprep.subr.mxu0 0.0
        %1727 = vmatpush2.msra.mxu0 0.0
        %1728 = vmatprep.subr.mxu0 0.0
        %1729 = vmatpush2.msra.mxu0 0.0
        %1730 = vmatprep.subr.mxu0 0.0
        %1731 = vmatpush2.msra.mxu0 0.0
        %1732 = vmatprep.subr.mxu0 0.0
        %1733 = vmatpush2.msra.mxu0 0.0
        %1734 = vmatprep.subr.mxu0 0.0
        %1735 = vmatpush2.msra.mxu0 0.0
        %1736 = vmatprep.subr.mxu0 0.0
        %1737 = vmatpush2.msra.mxu0 0.0
        %1738 = vmatprep.subr.mxu0 0.0
        %1739 = vmatpush2.msra.mxu0 0.0
        %1740 = vmatprep.subr.mxu0 0.0
        %1741 = vmatpush2.msra.mxu0 0.0
        %1742 = vmatprep.subr.mxu0 0.0
        %1743 = vmatpush2.msra.mxu0 0.0
        %1744 = vmatprep.subr.mxu0 0.0
        %1745 = vmatpush2.msra.mxu0 0.0
        %1746 = vmatprep.subr.mxu0 0.0
        %1747 = vmatpush2.msra.mxu0 0.0
        %1748 = vmatprep.subr.mxu0 0.0
        %1749 = vmatpush2.msra.mxu0 0.0
        %1750 = vmatprep.subr.mxu0 0.0
        %1751 = vmatpush2.msra.mxu0 0.0
        %1752 = vmatprep.mubr.f32.mxu0 0.0
        %1753 = vmatmul.mubr.f32.gmra.mxu0 %v1680
        %v1754 = vpop.f32.mrf.mxu0
        %v1755 = vadd.f32 0.0, %v1754
        %v1756 = vpop.f32.mrf.mxu0
        %1757 = vmatprep.mubr.f32.mxu0 0.0
        %1758 = vmatmul.mubr.f32.gmra.mxu0 %v1682
        %v1759 = vpop.f32.mrf.mxu0
        %v1760 = vadd.f32 0.0, %v1759
        %v1761 = vpop.f32.mrf.mxu0
        %1762 = vmatprep.mubr.f32.mxu0 0.0
        %1763 = vmatmul.mubr.f32.gmra.mxu0 %v1684
        %v1764 = vpop.f32.mrf.mxu0
        %v1765 = vadd.f32 0.0, %v1764
        %v1766 = vpop.f32.mrf.mxu0
        %1767 = vmatprep.mubr.f32.mxu0 0.0
        %1768 = vmatmul.mubr.f32.gmra.mxu0 %v1686
        %v1769 = vpop.f32.mrf.mxu0
        %v1770 = vadd.f32 0.0, %v1769
        %v1771 = vpop.f32.mrf.mxu0
        %1772 = vdwg.mxu0
        %1773 = vrot.lane.b32.xlu0 %v1557, 64
        %v1774 = vpop.permute.xlu0 %1773
        %1775 = vrot.lane.b32.xlu0 %v1562, 64
        %v1776 = vpop.permute.xlu0 %1775
        %1777 = vrot.lane.b32.xlu0 %v1567, 64
        %v1778 = vpop.permute.xlu0 %1777
        %1779 = vrot.lane.b32.xlu0 %v1572, 64
        %v1780 = vpop.permute.xlu0 %1779
        %v1781 = vsel %vm285, %v1774, 0
        %v1783 = vsel %vm285, %v1776, 0
        %v1785 = vsel %vm285, %v1778, 0
        %v1787 = vsel %vm285, %v1780, 0
        %1789 = vmatprep.subr.mxu0 0.0
        %1790 = vmatpush1.msra.mxu0 0.0
        %1791 = vmatprep.subr.mxu0 0.0
        %1792 = vmatpush1.msra.mxu0 0.0
        %1793 = vmatprep.subr.mxu0 0.0
        %1794 = vmatpush1.msra.mxu0 0.0
        %1795 = vmatprep.subr.mxu0 0.0
        %1796 = vmatpush1.msra.mxu0 0.0
        %1797 = vmatprep.subr.mxu0 0.0
        %1798 = vmatpush1.msra.mxu0 0.0
        %1799 = vmatprep.subr.mxu0 0.0
        %1800 = vmatpush1.msra.mxu0 0.0
        %1801 = vmatprep.subr.mxu0 0.0
        %1802 = vmatpush1.msra.mxu0 0.0
        %1803 = vmatprep.subr.mxu0 0.0
        %1804 = vmatpush1.msra.mxu0 0.0
        %1805 = vmatprep.subr.mxu0 0.0
        %1806 = vmatpush1.msra.mxu0 0.0
        %1807 = vmatprep.subr.mxu0 0.0
        %1808 = vmatpush1.msra.mxu0 0.0
        %1809 = vmatprep.subr.mxu0 0.0
        %1810 = vmatpush1.msra.mxu0 0.0
        %1811 = vmatprep.subr.mxu0 0.0
        %1812 = vmatpush1.msra.mxu0 0.0
        %1813 = vmatprep.subr.mxu0 0.0
        %1814 = vmatpush1.msra.mxu0 %v1477
        %1815 = vmatprep.subr.mxu0 0.0
        %1816 = vmatpush1.msra.mxu0 %v1476
        %1817 = vmatprep.subr.mxu0 0.0
        %1818 = vmatpush1.msra.mxu0 %v1475
        %1819 = vmatprep.subr.mxu0 0.0
        %1820 = vmatpush1.msra.mxu0 %v1474
        %1821 = vmatprep.subr.mxu0 0.0
        %1822 = vmatpush2.msra.mxu0 0.0
        %1823 = vmatprep.subr.mxu0 0.0
        %1824 = vmatpush2.msra.mxu0 0.0
        %1825 = vmatprep.subr.mxu0 0.0
        %1826 = vmatpush2.msra.mxu0 0.0
        %1827 = vmatprep.subr.mxu0 0.0
        %1828 = vmatpush2.msra.mxu0 0.0
        %1829 = vmatprep.subr.mxu0 0.0
        %1830 = vmatpush2.msra.mxu0 0.0
        %1831 = vmatprep.subr.mxu0 0.0
        %1832 = vmatpush2.msra.mxu0 0.0
        %1833 = vmatprep.subr.mxu0 0.0
        %1834 = vmatpush2.msra.mxu0 0.0
        %1835 = vmatprep.subr.mxu0 0.0
        %1836 = vmatpush2.msra.mxu0 0.0
        %1837 = vmatprep.subr.mxu0 0.0
        %1838 = vmatpush2.msra.mxu0 0.0
        %1839 = vmatprep.subr.mxu0 0.0
        %1840 = vmatpush2.msra.mxu0 0.0
        %1841 = vmatprep.subr.mxu0 0.0
        %1842 = vmatpush2.msra.mxu0 0.0
        %1843 = vmatprep.subr.mxu0 0.0
        %1844 = vmatpush2.msra.mxu0 0.0
        %1845 = vmatprep.subr.mxu0 0.0
        %1846 = vmatpush2.msra.mxu0 0.0
        %1847 = vmatprep.subr.mxu0 0.0
        %1848 = vmatpush2.msra.mxu0 0.0
        %1849 = vmatprep.subr.mxu0 0.0
        %1850 = vmatpush2.msra.mxu0 0.0
        %1851 = vmatprep.subr.mxu0 0.0
        %1852 = vmatpush2.msra.mxu0 0.0
        %1853 = vmatprep.mubr.f32.mxu0 0.0
        %1854 = vmatmul.mubr.f32.gmra.mxu0 %v1781
        %v1855 = vpop.f32.mrf.mxu0
        %v1856 = vadd.f32 0.0, %v1855
        %v1857 = vpop.f32.mrf.mxu0
        %1858 = vmatprep.mubr.f32.mxu0 0.0
        %1859 = vmatmul.mubr.f32.gmra.mxu0 %v1783
        %v1860 = vpop.f32.mrf.mxu0
        %v1861 = vadd.f32 0.0, %v1860
        %v1862 = vpop.f32.mrf.mxu0
        %1863 = vmatprep.mubr.f32.mxu0 0.0
        %1864 = vmatmul.mubr.f32.gmra.mxu0 %v1785
        %v1865 = vpop.f32.mrf.mxu0
        %v1866 = vadd.f32 0.0, %v1865
        %v1867 = vpop.f32.mrf.mxu0
        %1868 = vmatprep.mubr.f32.mxu0 0.0
        %1869 = vmatmul.mubr.f32.gmra.mxu0 %v1787
        %v1870 = vpop.f32.mrf.mxu0
        %v1871 = vadd.f32 0.0, %v1870
        %v1872 = vpop.f32.mrf.mxu0
        %1873 = vdwg.mxu0
        %1874 = vrot.lane.b32.xlu0 %v1557, 32
        %v1875 = vpop.permute.xlu0 %1874
        %1876 = vrot.lane.b32.xlu0 %v1562, 32
        %v1877 = vpop.permute.xlu0 %1876
        %1878 = vrot.lane.b32.xlu0 %v1567, 32
        %v1879 = vpop.permute.xlu0 %1878
        %1880 = vrot.lane.b32.xlu0 %v1572, 32
        %v1881 = vpop.permute.xlu0 %1880
        %v1882 = vsel %vm285, %v1875, 0
        %v1884 = vsel %vm285, %v1877, 0
        %v1886 = vsel %vm285, %v1879, 0
        %v1888 = vsel %vm285, %v1881, 0
        %1890 = vmatprep.subr.mxu0 0.0
        %1891 = vmatpush1.msra.mxu0 0.0
        %1892 = vmatprep.subr.mxu0 0.0
        %1893 = vmatpush1.msra.mxu0 0.0
        %1894 = vmatprep.subr.mxu0 0.0
        %1895 = vmatpush1.msra.mxu0 0.0
        %1896 = vmatprep.subr.mxu0 0.0
        %1897 = vmatpush1.msra.mxu0 0.0
        %1898 = vmatprep.subr.mxu0 0.0
        %1899 = vmatpush1.msra.mxu0 0.0
        %1900 = vmatprep.subr.mxu0 0.0
        %1901 = vmatpush1.msra.mxu0 0.0
        %1902 = vmatprep.subr.mxu0 0.0
        %1903 = vmatpush1.msra.mxu0 0.0
        %1904 = vmatprep.subr.mxu0 0.0
        %1905 = vmatpush1.msra.mxu0 0.0
        %1906 = vmatprep.subr.mxu0 0.0
        %1907 = vmatpush1.msra.mxu0 0.0
        %1908 = vmatprep.subr.mxu0 0.0
        %1909 = vmatpush1.msra.mxu0 0.0
        %1910 = vmatprep.subr.mxu0 0.0
        %1911 = vmatpush1.msra.mxu0 0.0
        %1912 = vmatprep.subr.mxu0 0.0
        %1913 = vmatpush1.msra.mxu0 0.0
        %1914 = vmatprep.subr.mxu0 0.0
        %1915 = vmatpush1.msra.mxu0 %v1477
        %1916 = vmatprep.subr.mxu0 0.0
        %1917 = vmatpush1.msra.mxu0 %v1476
        %1918 = vmatprep.subr.mxu0 0.0
        %1919 = vmatpush1.msra.mxu0 %v1475
        %1920 = vmatprep.subr.mxu0 0.0
        %1921 = vmatpush1.msra.mxu0 %v1474
        %1922 = vmatprep.subr.mxu0 0.0
        %1923 = vmatpush2.msra.mxu0 0.0
        %1924 = vmatprep.subr.mxu0 0.0
        %1925 = vmatpush2.msra.mxu0 0.0
        %1926 = vmatprep.subr.mxu0 0.0
        %1927 = vmatpush2.msra.mxu0 0.0
        %1928 = vmatprep.subr.mxu0 0.0
        %1929 = vmatpush2.msra.mxu0 0.0
        %1930 = vmatprep.subr.mxu0 0.0
        %1931 = vmatpush2.msra.mxu0 0.0
        %1932 = vmatprep.subr.mxu0 0.0
        %1933 = vmatpush2.msra.mxu0 0.0
        %1934 = vmatprep.subr.mxu0 0.0
        %1935 = vmatpush2.msra.mxu0 0.0
        %1936 = vmatprep.subr.mxu0 0.0
        %1937 = vmatpush2.msra.mxu0 0.0
        %1938 = vmatprep.subr.mxu0 0.0
        %1939 = vmatpush2.msra.mxu0 0.0
        %1940 = vmatprep.subr.mxu0 0.0
        %1941 = vmatpush2.msra.mxu0 0.0
        %1942 = vmatprep.subr.mxu0 0.0
        %1943 = vmatpush2.msra.mxu0 0.0
        %1944 = vmatprep.subr.mxu0 0.0
        %1945 = vmatpush2.msra.mxu0 0.0
        %1946 = vmatprep.subr.mxu0 0.0
        %1947 = vmatpush2.msra.mxu0 0.0
        %1948 = vmatprep.subr.mxu0 0.0
        %1949 = vmatpush2.msra.mxu0 0.0
        %1950 = vmatprep.subr.mxu0 0.0
        %1951 = vmatpush2.msra.mxu0 0.0
        %1952 = vmatprep.subr.mxu0 0.0
        %1953 = vmatpush2.msra.mxu0 0.0
        %1954 = vmatprep.mubr.f32.mxu0 0.0
        %1955 = vmatmul.mubr.f32.gmra.mxu0 %v1882
        %v1956 = vpop.f32.mrf.mxu0
        %v1957 = vadd.f32 0.0, %v1956
        %v1958 = vpop.f32.mrf.mxu0
        %1959 = vmatprep.mubr.f32.mxu0 0.0
        %1960 = vmatmul.mubr.f32.gmra.mxu0 %v1884
        %v1961 = vpop.f32.mrf.mxu0
        %v1962 = vadd.f32 0.0, %v1961
        %v1963 = vpop.f32.mrf.mxu0
        %1964 = vmatprep.mubr.f32.mxu0 0.0
        %1965 = vmatmul.mubr.f32.gmra.mxu0 %v1886
        %v1966 = vpop.f32.mrf.mxu0
        %v1967 = vadd.f32 0.0, %v1966
        %v1968 = vpop.f32.mrf.mxu0
        %1969 = vmatprep.mubr.f32.mxu0 0.0
        %1970 = vmatmul.mubr.f32.gmra.mxu0 %v1888
        %v1971 = vpop.f32.mrf.mxu0
        %v1972 = vadd.f32 0.0, %v1971
        %v1973 = vpop.f32.mrf.mxu0
        %1974 = vdwg.mxu0
        %1979 = vrot.lane.b32.xlu0 %v1755, 32
        %v1980 = vpop.permute.xlu0 %1979
        %1981 = vrot.lane.b32.xlu0 %v1760, 32
        %v1982 = vpop.permute.xlu0 %1981
        %1983 = vrot.lane.b32.xlu0 %v1765, 32
        %v1984 = vpop.permute.xlu0 %1983
        %1985 = vrot.lane.b32.xlu0 %v1770, 32
        %v1986 = vpop.permute.xlu0 %1985
        %1995 = vrot.lane.b32.xlu0 %v1856, 64
        %v1996 = vpop.permute.xlu0 %1995
        %1997 = vrot.lane.b32.xlu0 %v1861, 64
        %v1998 = vpop.permute.xlu0 %1997
        %1999 = vrot.lane.b32.xlu0 %v1866, 64
        %v2000 = vpop.permute.xlu0 %1999
        %2001 = vrot.lane.b32.xlu0 %v1871, 64
        %v2002 = vpop.permute.xlu0 %2001
        %2011 = vrot.lane.b32.xlu0 %v1957, 96
        %v2012 = vpop.permute.xlu0 %2011
        %2013 = vrot.lane.b32.xlu0 %v1962, 96
        %v2014 = vpop.permute.xlu0 %2013
        %2015 = vrot.lane.b32.xlu0 %v1967, 96
        %v2016 = vpop.permute.xlu0 %2015
        %2017 = vrot.lane.b32.xlu0 %v1972, 96
        %v2018 = vpop.permute.xlu0 %2017
        %v2023 = vsel %vm285, %v1654, %v1980
        %v2024 = vsel %vm285, %v1659, %v1982
        %v2025 = vsel %vm285, %v1664, %v1984
        %v2026 = vsel %vm285, %v1669, %v1986
        %v2027 = vsel %vm835, %v2023, %v1996
        %v2028 = vsel %vm835, %v2024, %v1998
        %v2029 = vsel %vm835, %v2025, %v2000
        %v2030 = vsel %vm835, %v2026, %v2002
        %v2031 = vsel %vm840, %v2027, %v2012
        %v2032 = vsel %vm840, %v2028, %v2014
        %v2033 = vsel %vm840, %v2029, %v2016
        %v2034 = vsel %vm840, %v2030, %v2018
        %v2035 = vsub.f32 %v2031, %v1436
        %v2036 = vsub.f32 %v2032, %v1437
        %v2037 = vsub.f32 %v2033, %v1438
        %v2038 = vsub.f32 %v2034, %v1439
        %v2039 = vstv %s1454
        %v2040 = vmul.f32 %v2039, %v2035
        %v2041 = vmul.f32 %v2039, %v2036
        %v2042 = vmul.f32 %v2039, %v2037
        %v2043 = vmul.f32 %v2039, %v2038
        %v2044 = vadd.f32 %v2031, %v2040
        %v2045 = vadd.f32 %v2032, %v2041
        %v2046 = vadd.f32 %v2033, %v2042
        %v2047 = vadd.f32 %v2034, %v2043
        %s2048 = sld [smem:[#allocation3 + $0x3]]
        %s2049 = sld [smem:[#allocation4 + $0x3]]
        %v2050 = vsub.f32 %v2044, %v258
        %v2051 = vsub.f32 %v2045, %v259
        %v2052 = vsub.f32 %v2046, %v260
        %v2053 = vsub.f32 %v2047, %v261
        %v2054 = vstv %s2048
        %v2055 = vmul.f32 %v2054, %v2050
        %v2056 = vmul.f32 %v2054, %v2051
        %v2057 = vmul.f32 %v2054, %v2052
        %v2058 = vmul.f32 %v2054, %v2053
        %v2059 = vsub.f32 %v2044, %v2055
        %v2060 = vsub.f32 %v2045, %v2056
        %v2061 = vsub.f32 %v2046, %v2057
        %v2062 = vsub.f32 %v2047, %v2058
        %s2063 = scalar_lea.vmem %s3, 96
        %v2064 = vld [vmem:[%s2063] sm:$0xff]
        %v2065 = vld [vmem:[%s2063 + $0x8] sm:$0xff]
        %v2066 = vld [vmem:[%s2063 + $0x10] sm:$0xff]
        %v2067 = vld [vmem:[%s2063 + $0x18] sm:$0xff]
        %s2068 = scalar_lea.vmem %s4, 96
        %v2069 = vld [vmem:[%s2068] sm:$0xff]
        %v2070 = vld [vmem:[%s2068 + $0x8] sm:$0xff]
        %v2071 = vld [vmem:[%s2068 + $0x10] sm:$0xff]
        %v2072 = vld [vmem:[%s2068 + $0x18] sm:$0xff]
        %v2074 = vsel %vm285, %v2064, 0
        %v2077 = vsel %vm285, %v2065, 0
        %v2080 = vsel %vm285, %v2066, 0
        %v2083 = vsel %vm285, %v2067, 0
        %2085 = vmatprep.subr.mxu0 0.0
        %2086 = vmatpush1.msra.mxu0 0.0
        %2087 = vmatprep.subr.mxu0 0.0
        %2088 = vmatpush1.msra.mxu0 0.0
        %2089 = vmatprep.subr.mxu0 0.0
        %2090 = vmatpush1.msra.mxu0 0.0
        %2091 = vmatprep.subr.mxu0 0.0
        %2092 = vmatpush1.msra.mxu0 0.0
        %2093 = vmatprep.subr.mxu0 0.0
        %2094 = vmatpush1.msra.mxu0 0.0
        %2095 = vmatprep.subr.mxu0 0.0
        %2096 = vmatpush1.msra.mxu0 0.0
        %2097 = vmatprep.subr.mxu0 0.0
        %2098 = vmatpush1.msra.mxu0 0.0
        %2099 = vmatprep.subr.mxu0 0.0
        %2100 = vmatpush1.msra.mxu0 0.0
        %2101 = vmatprep.subr.mxu0 0.0
        %2102 = vmatpush1.msra.mxu0 0.0
        %2103 = vmatprep.subr.mxu0 0.0
        %2104 = vmatpush1.msra.mxu0 0.0
        %2105 = vmatprep.subr.mxu0 0.0
        %2106 = vmatpush1.msra.mxu0 0.0
        %2107 = vmatprep.subr.mxu0 0.0
        %2108 = vmatpush1.msra.mxu0 0.0
        %2109 = vmatprep.subr.mxu0 0.0
        %2110 = vmatpush1.msra.mxu0 %v2062
        %2111 = vmatprep.subr.mxu0 0.0
        %2112 = vmatpush1.msra.mxu0 %v2061
        %2113 = vmatprep.subr.mxu0 0.0
        %2114 = vmatpush1.msra.mxu0 %v2060
        %2115 = vmatprep.subr.mxu0 0.0
        %2116 = vmatpush1.msra.mxu0 %v2059
        %2117 = vmatprep.subr.mxu0 0.0
        %2118 = vmatpush2.msra.mxu0 0.0
        %2119 = vmatprep.subr.mxu0 0.0
        %2120 = vmatpush2.msra.mxu0 0.0
        %2121 = vmatprep.subr.mxu0 0.0
        %2122 = vmatpush2.msra.mxu0 0.0
        %2123 = vmatprep.subr.mxu0 0.0
        %2124 = vmatpush2.msra.mxu0 0.0
        %2125 = vmatprep.subr.mxu0 0.0
        %2126 = vmatpush2.msra.mxu0 0.0
        %2127 = vmatprep.subr.mxu0 0.0
        %2128 = vmatpush2.msra.mxu0 0.0
        %2129 = vmatprep.subr.mxu0 0.0
        %2130 = vmatpush2.msra.mxu0 0.0
        %2131 = vmatprep.subr.mxu0 0.0
        %2132 = vmatpush2.msra.mxu0 0.0
        %2133 = vmatprep.subr.mxu0 0.0
        %2134 = vmatpush2.msra.mxu0 0.0
        %2135 = vmatprep.subr.mxu0 0.0
        %2136 = vmatpush2.msra.mxu0 0.0
        %2137 = vmatprep.subr.mxu0 0.0
        %2138 = vmatpush2.msra.mxu0 0.0
        %2139 = vmatprep.subr.mxu0 0.0
        %2140 = vmatpush2.msra.mxu0 0.0
        %2141 = vmatprep.subr.mxu0 0.0
        %2142 = vmatpush2.msra.mxu0 0.0
        %2143 = vmatprep.subr.mxu0 0.0
        %2144 = vmatpush2.msra.mxu0 0.0
        %2145 = vmatprep.subr.mxu0 0.0
        %2146 = vmatpush2.msra.mxu0 0.0
        %2147 = vmatprep.subr.mxu0 0.0
        %2148 = vmatpush2.msra.mxu0 0.0
        %2149 = vmatprep.mubr.f32.mxu0 0.0
        %2150 = vmatmul.mubr.f32.gmra.mxu0 %v2074
        %v2151 = vpop.f32.mrf.mxu0
        %v2152 = vadd.f32 0.0, %v2151
        %v2153 = vpop.f32.mrf.mxu0
        %2154 = vmatprep.mubr.f32.mxu0 0.0
        %2155 = vmatmul.mubr.f32.gmra.mxu0 %v2077
        %v2156 = vpop.f32.mrf.mxu0
        %v2157 = vadd.f32 0.0, %v2156
        %v2158 = vpop.f32.mrf.mxu0
        %2159 = vmatprep.mubr.f32.mxu0 0.0
        %2160 = vmatmul.mubr.f32.gmra.mxu0 %v2080
        %v2161 = vpop.f32.mrf.mxu0
        %v2162 = vadd.f32 0.0, %v2161
        %v2163 = vpop.f32.mrf.mxu0
        %2164 = vmatprep.mubr.f32.mxu0 0.0
        %2165 = vmatmul.mubr.f32.gmra.mxu0 %v2083
        %v2166 = vpop.f32.mrf.mxu0
        %v2167 = vadd.f32 0.0, %v2166
        %v2168 = vpop.f32.mrf.mxu0
        %2169 = vdwg.mxu0
        %v2171 = vsel %vm285, %v2152, 0
        %v2174 = vsel %vm285, %v2157, 0
        %v2177 = vsel %vm285, %v2162, 0
        %v2180 = vsel %vm285, %v2167, 0
        %2182 = vmatprep.subr.mxu0 0.0
        %2183 = vmatpush1.msra.mxu0 0.0
        %2184 = vmatprep.subr.mxu0 0.0
        %2185 = vmatpush1.msra.mxu0 0.0
        %2186 = vmatprep.subr.mxu0 0.0
        %2187 = vmatpush1.msra.mxu0 0.0
        %2188 = vmatprep.subr.mxu0 0.0
        %2189 = vmatpush1.msra.mxu0 0.0
        %2190 = vmatprep.subr.mxu0 0.0
        %2191 = vmatpush1.msra.mxu0 0.0
        %2192 = vmatprep.subr.mxu0 0.0
        %2193 = vmatpush1.msra.mxu0 0.0
        %2194 = vmatprep.subr.mxu0 0.0
        %2195 = vmatpush1.msra.mxu0 0.0
        %2196 = vmatprep.subr.mxu0 0.0
        %2197 = vmatpush1.msra.mxu0 0.0
        %2198 = vmatprep.subr.mxu0 0.0
        %2199 = vmatpush1.msra.mxu0 0.0
        %2200 = vmatprep.subr.mxu0 0.0
        %2201 = vmatpush1.msra.mxu0 0.0
        %2202 = vmatprep.subr.mxu0 0.0
        %2203 = vmatpush1.msra.mxu0 0.0
        %2204 = vmatprep.subr.mxu0 0.0
        %2205 = vmatpush1.msra.mxu0 0.0
        %2206 = vmatprep.subr.mxu0 0.0
        %2207 = vmatpush1.msra.mxu0 %v2072
        %2208 = vmatprep.subr.mxu0 0.0
        %2209 = vmatpush1.msra.mxu0 %v2071
        %2210 = vmatprep.subr.mxu0 0.0
        %2211 = vmatpush1.msra.mxu0 %v2070
        %2212 = vmatprep.subr.mxu0 0.0
        %2213 = vmatpush1.msra.mxu0 %v2069
        %2214 = vmatprep.subr.mxu0 0.0
        %2215 = vmatpush2.msra.mxu0 0.0
        %2216 = vmatprep.subr.mxu0 0.0
        %2217 = vmatpush2.msra.mxu0 0.0
        %2218 = vmatprep.subr.mxu0 0.0
        %2219 = vmatpush2.msra.mxu0 0.0
        %2220 = vmatprep.subr.mxu0 0.0
        %2221 = vmatpush2.msra.mxu0 0.0
        %2222 = vmatprep.subr.mxu0 0.0
        %2223 = vmatpush2.msra.mxu0 0.0
        %2224 = vmatprep.subr.mxu0 0.0
        %2225 = vmatpush2.msra.mxu0 0.0
        %2226 = vmatprep.subr.mxu0 0.0
        %2227 = vmatpush2.msra.mxu0 0.0
        %2228 = vmatprep.subr.mxu0 0.0
        %2229 = vmatpush2.msra.mxu0 0.0
        %2230 = vmatprep.subr.mxu0 0.0
        %2231 = vmatpush2.msra.mxu0 0.0
        %2232 = vmatprep.subr.mxu0 0.0
        %2233 = vmatpush2.msra.mxu0 0.0
        %2234 = vmatprep.subr.mxu0 0.0
        %2235 = vmatpush2.msra.mxu0 0.0
        %2236 = vmatprep.subr.mxu0 0.0
        %2237 = vmatpush2.msra.mxu0 0.0
        %2238 = vmatprep.subr.mxu0 0.0
        %2239 = vmatpush2.msra.mxu0 0.0
        %2240 = vmatprep.subr.mxu0 0.0
        %2241 = vmatpush2.msra.mxu0 0.0
        %2242 = vmatprep.subr.mxu0 0.0
        %2243 = vmatpush2.msra.mxu0 0.0
        %2244 = vmatprep.subr.mxu0 0.0
        %2245 = vmatpush2.msra.mxu0 0.0
        %2246 = vmatprep.mubr.f32.mxu0 0.0
        %2247 = vmatmul.mubr.f32.gmra.mxu0 %v2171
        %v2248 = vpop.f32.mrf.mxu0
        %v2249 = vadd.f32 0.0, %v2248
        %v2250 = vpop.f32.mrf.mxu0
        %2251 = vmatprep.mubr.f32.mxu0 0.0
        %2252 = vmatmul.mubr.f32.gmra.mxu0 %v2174
        %v2253 = vpop.f32.mrf.mxu0
        %v2254 = vadd.f32 0.0, %v2253
        %v2255 = vpop.f32.mrf.mxu0
        %2256 = vmatprep.mubr.f32.mxu0 0.0
        %2257 = vmatmul.mubr.f32.gmra.mxu0 %v2177
        %v2258 = vpop.f32.mrf.mxu0
        %v2259 = vadd.f32 0.0, %v2258
        %v2260 = vpop.f32.mrf.mxu0
        %2261 = vmatprep.mubr.f32.mxu0 0.0
        %2262 = vmatmul.mubr.f32.gmra.mxu0 %v2180
        %v2263 = vpop.f32.mrf.mxu0
        %v2264 = vadd.f32 0.0, %v2263
        %v2265 = vpop.f32.mrf.mxu0
        %2266 = vdwg.mxu0
        %2267 = vrot.lane.b32.xlu0 %v2152, 96
        %v2268 = vpop.permute.xlu0 %2267
        %2269 = vrot.lane.b32.xlu0 %v2157, 96
        %v2270 = vpop.permute.xlu0 %2269
        %2271 = vrot.lane.b32.xlu0 %v2162, 96
        %v2272 = vpop.permute.xlu0 %2271
        %2273 = vrot.lane.b32.xlu0 %v2167, 96
        %v2274 = vpop.permute.xlu0 %2273
        %v2275 = vsel %vm285, %v2268, 0
        %v2277 = vsel %vm285, %v2270, 0
        %v2279 = vsel %vm285, %v2272, 0
        %v2281 = vsel %vm285, %v2274, 0
        %2283 = vmatprep.subr.mxu0 0.0
        %2284 = vmatpush1.msra.mxu0 0.0
        %2285 = vmatprep.subr.mxu0 0.0
        %2286 = vmatpush1.msra.mxu0 0.0
        %2287 = vmatprep.subr.mxu0 0.0
        %2288 = vmatpush1.msra.mxu0 0.0
        %2289 = vmatprep.subr.mxu0 0.0
        %2290 = vmatpush1.msra.mxu0 0.0
        %2291 = vmatprep.subr.mxu0 0.0
        %2292 = vmatpush1.msra.mxu0 0.0
        %2293 = vmatprep.subr.mxu0 0.0
        %2294 = vmatpush1.msra.mxu0 0.0
        %2295 = vmatprep.subr.mxu0 0.0
        %2296 = vmatpush1.msra.mxu0 0.0
        %2297 = vmatprep.subr.mxu0 0.0
        %2298 = vmatpush1.msra.mxu0 0.0
        %2299 = vmatprep.subr.mxu0 0.0
        %2300 = vmatpush1.msra.mxu0 0.0
        %2301 = vmatprep.subr.mxu0 0.0
        %2302 = vmatpush1.msra.mxu0 0.0
        %2303 = vmatprep.subr.mxu0 0.0
        %2304 = vmatpush1.msra.mxu0 0.0
        %2305 = vmatprep.subr.mxu0 0.0
        %2306 = vmatpush1.msra.mxu0 0.0
        %2307 = vmatprep.subr.mxu0 0.0
        %2308 = vmatpush1.msra.mxu0 %v2072
        %2309 = vmatprep.subr.mxu0 0.0
        %2310 = vmatpush1.msra.mxu0 %v2071
        %2311 = vmatprep.subr.mxu0 0.0
        %2312 = vmatpush1.msra.mxu0 %v2070
        %2313 = vmatprep.subr.mxu0 0.0
        %2314 = vmatpush1.msra.mxu0 %v2069
        %2315 = vmatprep.subr.mxu0 0.0
        %2316 = vmatpush2.msra.mxu0 0.0
        %2317 = vmatprep.subr.mxu0 0.0
        %2318 = vmatpush2.msra.mxu0 0.0
        %2319 = vmatprep.subr.mxu0 0.0
        %2320 = vmatpush2.msra.mxu0 0.0
        %2321 = vmatprep.subr.mxu0 0.0
        %2322 = vmatpush2.msra.mxu0 0.0
        %2323 = vmatprep.subr.mxu0 0.0
        %2324 = vmatpush2.msra.mxu0 0.0
        %2325 = vmatprep.subr.mxu0 0.0
        %2326 = vmatpush2.msra.mxu0 0.0
        %2327 = vmatprep.subr.mxu0 0.0
        %2328 = vmatpush2.msra.mxu0 0.0
        %2329 = vmatprep.subr.mxu0 0.0
        %2330 = vmatpush2.msra.mxu0 0.0
        %2331 = vmatprep.subr.mxu0 0.0
        %2332 = vmatpush2.msra.mxu0 0.0
        %2333 = vmatprep.subr.mxu0 0.0
        %2334 = vmatpush2.msra.mxu0 0.0
        %2335 = vmatprep.subr.mxu0 0.0
        %2336 = vmatpush2.msra.mxu0 0.0
        %2337 = vmatprep.subr.mxu0 0.0
        %2338 = vmatpush2.msra.mxu0 0.0
        %2339 = vmatprep.subr.mxu0 0.0
        %2340 = vmatpush2.msra.mxu0 0.0
        %2341 = vmatprep.subr.mxu0 0.0
        %2342 = vmatpush2.msra.mxu0 0.0
        %2343 = vmatprep.subr.mxu0 0.0
        %2344 = vmatpush2.msra.mxu0 0.0
        %2345 = vmatprep.subr.mxu0 0.0
        %2346 = vmatpush2.msra.mxu0 0.0
        %2347 = vmatprep.mubr.f32.mxu0 0.0
        %2348 = vmatmul.mubr.f32.gmra.mxu0 %v2275
        %v2349 = vpop.f32.mrf.mxu0
        %v2350 = vadd.f32 0.0, %v2349
        %v2351 = vpop.f32.mrf.mxu0
        %2352 = vmatprep.mubr.f32.mxu0 0.0
        %2353 = vmatmul.mubr.f32.gmra.mxu0 %v2277
        %v2354 = vpop.f32.mrf.mxu0
        %v2355 = vadd.f32 0.0, %v2354
        %v2356 = vpop.f32.mrf.mxu0
        %2357 = vmatprep.mubr.f32.mxu0 0.0
        %2358 = vmatmul.mubr.f32.gmra.mxu0 %v2279
        %v2359 = vpop.f32.mrf.mxu0
        %v2360 = vadd.f32 0.0, %v2359
        %v2361 = vpop.f32.mrf.mxu0
        %2362 = vmatprep.mubr.f32.mxu0 0.0
        %2363 = vmatmul.mubr.f32.gmra.mxu0 %v2281
        %v2364 = vpop.f32.mrf.mxu0
        %v2365 = vadd.f32 0.0, %v2364
        %v2366 = vpop.f32.mrf.mxu0
        %2367 = vdwg.mxu0
        %2368 = vrot.lane.b32.xlu0 %v2152, 64
        %v2369 = vpop.permute.xlu0 %2368
        %2370 = vrot.lane.b32.xlu0 %v2157, 64
        %v2371 = vpop.permute.xlu0 %2370
        %2372 = vrot.lane.b32.xlu0 %v2162, 64
        %v2373 = vpop.permute.xlu0 %2372
        %2374 = vrot.lane.b32.xlu0 %v2167, 64
        %v2375 = vpop.permute.xlu0 %2374
        %v2376 = vsel %vm285, %v2369, 0
        %v2378 = vsel %vm285, %v2371, 0
        %v2380 = vsel %vm285, %v2373, 0
        %v2382 = vsel %vm285, %v2375, 0
        %2384 = vmatprep.subr.mxu0 0.0
        %2385 = vmatpush1.msra.mxu0 0.0
        %2386 = vmatprep.subr.mxu0 0.0
        %2387 = vmatpush1.msra.mxu0 0.0
        %2388 = vmatprep.subr.mxu0 0.0
        %2389 = vmatpush1.msra.mxu0 0.0
        %2390 = vmatprep.subr.mxu0 0.0
        %2391 = vmatpush1.msra.mxu0 0.0
        %2392 = vmatprep.subr.mxu0 0.0
        %2393 = vmatpush1.msra.mxu0 0.0
        %2394 = vmatprep.subr.mxu0 0.0
        %2395 = vmatpush1.msra.mxu0 0.0
        %2396 = vmatprep.subr.mxu0 0.0
        %2397 = vmatpush1.msra.mxu0 0.0
        %2398 = vmatprep.subr.mxu0 0.0
        %2399 = vmatpush1.msra.mxu0 0.0
        %2400 = vmatprep.subr.mxu0 0.0
        %2401 = vmatpush1.msra.mxu0 0.0
        %2402 = vmatprep.subr.mxu0 0.0
        %2403 = vmatpush1.msra.mxu0 0.0
        %2404 = vmatprep.subr.mxu0 0.0
        %2405 = vmatpush1.msra.mxu0 0.0
        %2406 = vmatprep.subr.mxu0 0.0
        %2407 = vmatpush1.msra.mxu0 0.0
        %2408 = vmatprep.subr.mxu0 0.0
        %2409 = vmatpush1.msra.mxu0 %v2072
        %2410 = vmatprep.subr.mxu0 0.0
        %2411 = vmatpush1.msra.mxu0 %v2071
        %2412 = vmatprep.subr.mxu0 0.0
        %2413 = vmatpush1.msra.mxu0 %v2070
        %2414 = vmatprep.subr.mxu0 0.0
        %2415 = vmatpush1.msra.mxu0 %v2069
        %2416 = vmatprep.subr.mxu0 0.0
        %2417 = vmatpush2.msra.mxu0 0.0
        %2418 = vmatprep.subr.mxu0 0.0
        %2419 = vmatpush2.msra.mxu0 0.0
        %2420 = vmatprep.subr.mxu0 0.0
        %2421 = vmatpush2.msra.mxu0 0.0
        %2422 = vmatprep.subr.mxu0 0.0
        %2423 = vmatpush2.msra.mxu0 0.0
        %2424 = vmatprep.subr.mxu0 0.0
        %2425 = vmatpush2.msra.mxu0 0.0
        %2426 = vmatprep.subr.mxu0 0.0
        %2427 = vmatpush2.msra.mxu0 0.0
        %2428 = vmatprep.subr.mxu0 0.0
        %2429 = vmatpush2.msra.mxu0 0.0
        %2430 = vmatprep.subr.mxu0 0.0
        %2431 = vmatpush2.msra.mxu0 0.0
        %2432 = vmatprep.subr.mxu0 0.0
        %2433 = vmatpush2.msra.mxu0 0.0
        %2434 = vmatprep.subr.mxu0 0.0
        %2435 = vmatpush2.msra.mxu0 0.0
        %2436 = vmatprep.subr.mxu0 0.0
        %2437 = vmatpush2.msra.mxu0 0.0
        %2438 = vmatprep.subr.mxu0 0.0
        %2439 = vmatpush2.msra.mxu0 0.0
        %2440 = vmatprep.subr.mxu0 0.0
        %2441 = vmatpush2.msra.mxu0 0.0
        %2442 = vmatprep.subr.mxu0 0.0
        %2443 = vmatpush2.msra.mxu0 0.0
        %2444 = vmatprep.subr.mxu0 0.0
        %2445 = vmatpush2.msra.mxu0 0.0
        %2446 = vmatprep.subr.mxu0 0.0
        %2447 = vmatpush2.msra.mxu0 0.0
        %2448 = vmatprep.mubr.f32.mxu0 0.0
        %2449 = vmatmul.mubr.f32.gmra.mxu0 %v2376
        %v2450 = vpop.f32.mrf.mxu0
        %v2451 = vadd.f32 0.0, %v2450
        %v2452 = vpop.f32.mrf.mxu0
        %2453 = vmatprep.mubr.f32.mxu0 0.0
        %2454 = vmatmul.mubr.f32.gmra.mxu0 %v2378
        %v2455 = vpop.f32.mrf.mxu0
        %v2456 = vadd.f32 0.0, %v2455
        %v2457 = vpop.f32.mrf.mxu0
        %2458 = vmatprep.mubr.f32.mxu0 0.0
        %2459 = vmatmul.mubr.f32.gmra.mxu0 %v2380
        %v2460 = vpop.f32.mrf.mxu0
        %v2461 = vadd.f32 0.0, %v2460
        %v2462 = vpop.f32.mrf.mxu0
        %2463 = vmatprep.mubr.f32.mxu0 0.0
        %2464 = vmatmul.mubr.f32.gmra.mxu0 %v2382
        %v2465 = vpop.f32.mrf.mxu0
        %v2466 = vadd.f32 0.0, %v2465
        %v2467 = vpop.f32.mrf.mxu0
        %2468 = vdwg.mxu0
        %2469 = vrot.lane.b32.xlu0 %v2152, 32
        %v2470 = vpop.permute.xlu0 %2469
        %2471 = vrot.lane.b32.xlu0 %v2157, 32
        %v2472 = vpop.permute.xlu0 %2471
        %2473 = vrot.lane.b32.xlu0 %v2162, 32
        %v2474 = vpop.permute.xlu0 %2473
        %2475 = vrot.lane.b32.xlu0 %v2167, 32
        %v2476 = vpop.permute.xlu0 %2475
        %v2477 = vsel %vm285, %v2470, 0
        %v2479 = vsel %vm285, %v2472, 0
        %v2481 = vsel %vm285, %v2474, 0
        %v2483 = vsel %vm285, %v2476, 0
        %2485 = vmatprep.subr.mxu0 0.0
        %2486 = vmatpush1.msra.mxu0 0.0
        %2487 = vmatprep.subr.mxu0 0.0
        %2488 = vmatpush1.msra.mxu0 0.0
        %2489 = vmatprep.subr.mxu0 0.0
        %2490 = vmatpush1.msra.mxu0 0.0
        %2491 = vmatprep.subr.mxu0 0.0
        %2492 = vmatpush1.msra.mxu0 0.0
        %2493 = vmatprep.subr.mxu0 0.0
        %2494 = vmatpush1.msra.mxu0 0.0
        %2495 = vmatprep.subr.mxu0 0.0
        %2496 = vmatpush1.msra.mxu0 0.0
        %2497 = vmatprep.subr.mxu0 0.0
        %2498 = vmatpush1.msra.mxu0 0.0
        %2499 = vmatprep.subr.mxu0 0.0
        %2500 = vmatpush1.msra.mxu0 0.0
        %2501 = vmatprep.subr.mxu0 0.0
        %2502 = vmatpush1.msra.mxu0 0.0
        %2503 = vmatprep.subr.mxu0 0.0
        %2504 = vmatpush1.msra.mxu0 0.0
        %2505 = vmatprep.subr.mxu0 0.0
        %2506 = vmatpush1.msra.mxu0 0.0
        %2507 = vmatprep.subr.mxu0 0.0
        %2508 = vmatpush1.msra.mxu0 0.0
        %2509 = vmatprep.subr.mxu0 0.0
        %2510 = vmatpush1.msra.mxu0 %v2072
        %2511 = vmatprep.subr.mxu0 0.0
        %2512 = vmatpush1.msra.mxu0 %v2071
        %2513 = vmatprep.subr.mxu0 0.0
        %2514 = vmatpush1.msra.mxu0 %v2070
        %2515 = vmatprep.subr.mxu0 0.0
        %2516 = vmatpush1.msra.mxu0 %v2069
        %2517 = vmatprep.subr.mxu0 0.0
        %2518 = vmatpush2.msra.mxu0 0.0
        %2519 = vmatprep.subr.mxu0 0.0
        %2520 = vmatpush2.msra.mxu0 0.0
        %2521 = vmatprep.subr.mxu0 0.0
        %2522 = vmatpush2.msra.mxu0 0.0
        %2523 = vmatprep.subr.mxu0 0.0
        %2524 = vmatpush2.msra.mxu0 0.0
        %2525 = vmatprep.subr.mxu0 0.0
        %2526 = vmatpush2.msra.mxu0 0.0
        %2527 = vmatprep.subr.mxu0 0.0
        %2528 = vmatpush2.msra.mxu0 0.0
        %2529 = vmatprep.subr.mxu0 0.0
        %2530 = vmatpush2.msra.mxu0 0.0
        %2531 = vmatprep.subr.mxu0 0.0
        %2532 = vmatpush2.msra.mxu0 0.0
        %2533 = vmatprep.subr.mxu0 0.0
        %2534 = vmatpush2.msra.mxu0 0.0
        %2535 = vmatprep.subr.mxu0 0.0
        %2536 = vmatpush2.msra.mxu0 0.0
        %2537 = vmatprep.subr.mxu0 0.0
        %2538 = vmatpush2.msra.mxu0 0.0
        %2539 = vmatprep.subr.mxu0 0.0
        %2540 = vmatpush2.msra.mxu0 0.0
        %2541 = vmatprep.subr.mxu0 0.0
        %2542 = vmatpush2.msra.mxu0 0.0
        %2543 = vmatprep.subr.mxu0 0.0
        %2544 = vmatpush2.msra.mxu0 0.0
        %2545 = vmatprep.subr.mxu0 0.0
        %2546 = vmatpush2.msra.mxu0 0.0
        %2547 = vmatprep.subr.mxu0 0.0
        %2548 = vmatpush2.msra.mxu0 0.0
        %2549 = vmatprep.mubr.f32.mxu0 0.0
        %2550 = vmatmul.mubr.f32.gmra.mxu0 %v2477
        %v2551 = vpop.f32.mrf.mxu0
        %v2552 = vadd.f32 0.0, %v2551
        %v2553 = vpop.f32.mrf.mxu0
        %2554 = vmatprep.mubr.f32.mxu0 0.0
        %2555 = vmatmul.mubr.f32.gmra.mxu0 %v2479
        %v2556 = vpop.f32.mrf.mxu0
        %v2557 = vadd.f32 0.0, %v2556
        %v2558 = vpop.f32.mrf.mxu0
        %2559 = vmatprep.mubr.f32.mxu0 0.0
        %2560 = vmatmul.mubr.f32.gmra.mxu0 %v2481
        %v2561 = vpop.f32.mrf.mxu0
        %v2562 = vadd.f32 0.0, %v2561
        %v2563 = vpop.f32.mrf.mxu0
        %2564 = vmatprep.mubr.f32.mxu0 0.0
        %2565 = vmatmul.mubr.f32.gmra.mxu0 %v2483
        %v2566 = vpop.f32.mrf.mxu0
        %v2567 = vadd.f32 0.0, %v2566
        %v2568 = vpop.f32.mrf.mxu0
        %2569 = vdwg.mxu0
        %2574 = vrot.lane.b32.xlu0 %v2350, 32
        %v2575 = vpop.permute.xlu0 %2574
        %2576 = vrot.lane.b32.xlu0 %v2355, 32
        %v2577 = vpop.permute.xlu0 %2576
        %2578 = vrot.lane.b32.xlu0 %v2360, 32
        %v2579 = vpop.permute.xlu0 %2578
        %2580 = vrot.lane.b32.xlu0 %v2365, 32
        %v2581 = vpop.permute.xlu0 %2580
        %2590 = vrot.lane.b32.xlu0 %v2451, 64
        %v2591 = vpop.permute.xlu0 %2590
        %2592 = vrot.lane.b32.xlu0 %v2456, 64
        %v2593 = vpop.permute.xlu0 %2592
        %2594 = vrot.lane.b32.xlu0 %v2461, 64
        %v2595 = vpop.permute.xlu0 %2594
        %2596 = vrot.lane.b32.xlu0 %v2466, 64
        %v2597 = vpop.permute.xlu0 %2596
        %2606 = vrot.lane.b32.xlu0 %v2552, 96
        %v2607 = vpop.permute.xlu0 %2606
        %2608 = vrot.lane.b32.xlu0 %v2557, 96
        %v2609 = vpop.permute.xlu0 %2608
        %2610 = vrot.lane.b32.xlu0 %v2562, 96
        %v2611 = vpop.permute.xlu0 %2610
        %2612 = vrot.lane.b32.xlu0 %v2567, 96
        %v2613 = vpop.permute.xlu0 %2612
        %v2618 = vsel %vm285, %v2249, %v2575
        %v2619 = vsel %vm285, %v2254, %v2577
        %v2620 = vsel %vm285, %v2259, %v2579
        %v2621 = vsel %vm285, %v2264, %v2581
        %v2622 = vsel %vm835, %v2618, %v2591
        %v2623 = vsel %vm835, %v2619, %v2593
        %v2624 = vsel %vm835, %v2620, %v2595
        %v2625 = vsel %vm835, %v2621, %v2597
        %v2626 = vsel %vm840, %v2622, %v2607
        %v2627 = vsel %vm840, %v2623, %v2609
        %v2628 = vsel %vm840, %v2624, %v2611
        %v2629 = vsel %vm840, %v2625, %v2613
        %v2630 = vsub.f32 %v2626, %v2031
        %v2631 = vsub.f32 %v2627, %v2032
        %v2632 = vsub.f32 %v2628, %v2033
        %v2633 = vsub.f32 %v2629, %v2034
        %v2634 = vstv %s2049
        %v2635 = vmul.f32 %v2634, %v2630
        %v2636 = vmul.f32 %v2634, %v2631
        %v2637 = vmul.f32 %v2634, %v2632
        %v2638 = vmul.f32 %v2634, %v2633
        %v2639 = vadd.f32 %v2626, %v2635
        %v2640 = vadd.f32 %v2627, %v2636
        %v2641 = vadd.f32 %v2628, %v2637
        %v2642 = vadd.f32 %v2629, %v2638
        %2643 = vst [vmem:[%s251] sm:$0xff] %v2639
        %2644 = vst [vmem:[%s251 + $0x8] sm:$0xff] %v2640
        %2645 = vst [vmem:[%s251 + $0x10] sm:$0xff] %v2641
        %2646 = vst [vmem:[%s251 + $0x18] sm:$0xff] %v2642
        %2647 = vst [vmem:[%s257] sm:$0xff] %v2626
        %2648 = vst [vmem:[%s257 + $0x8] sm:$0xff] %v2627
        %2649 = vst [vmem:[%s257 + $0x10] sm:$0xff] %v2628
        %2650 = vst [vmem:[%s257 + $0x18] sm:$0xff] %v2629
        %s2651 = sand.u32 %s104, 1
        %s2652 = sand.u32 %s104, 1
        %s2653 = smul.addr %s2652, 32
        %s2654 = scalar_lea.vmem [#allocation6], %s2653
        %s2655 = sand.u32 %s130, 1
        %s2656 = sand.u32 %s130, 1
        %s2657 = smul.addr %s2656, 32
        %s2658 = scalar_lea.vmem [#allocation7], %s2657
        // Predicated region
        $region71: #{unfolded_cadzow_up.1} parent=65 // pred_check
          %p2659 = pneg %p114
        $region72: #{unfolded_cadzow_up.1} parent=65 // pred_check_branch
          %2661 = sbr.rel (%p2659) target = $region74
        $region73: #{unfolded_cadzow_up.1} parent=65 // pred_region
          %s2662 = smul.addr %s28, 8
          %s2663 = scalar_lea.vmem %s5, %s2662
          // Predicated region
          $region75: #{unfolded_cadzow_up.1} parent=73 // pred_check
            _
          $region76: #{unfolded_cadzow_up.1} parent=73 // pred_check_branch
            %2665 = sbr.rel (0) target = $region78
          $region77: #{unfolded_cadzow_up.1} parent=73 // pred_region
            // Predicated region
            $region79: #{unfolded_cadzow_up.1} parent=77 // pred_check
              _
            $region80: #{unfolded_cadzow_up.1} parent=77 // pred_check_branch
              %2667 = sbr.rel (0) target = $region82
            $region81: #{unfolded_cadzow_up.1} parent=77 // pred_region
              // Predicated region
              $region94: #{unfolded_cadzow_up.1} parent=81 // pred_check
                _
              $region95: #{unfolded_cadzow_up.1} parent=81 // pred_check_branch
                %2689 = sbr.rel (0) target = $region97
              $region96: #{unfolded_cadzow_up.1} parent=81 // pred_region
                loop: start=0, step=1, limit=1
                $region98: #{unfolded_cadzow_up.1} parent=96 // loop_pre_header
                  _
                $region99: #{unfolded_cadzow_up.1} parent=96 // loop_header
                  %s2691 = sphi 0, %s2695
                  %p2692 = scmp.ge.s32.totalorder %s2691, 1
                  %s2696 = sphi %s2654, %s2654
                  %s2697 = sphi %s2663, %s2663
                $region100: #{unfolded_cadzow_up.1} parent=96 // loop_header_branch
                  %2694 = sbr.rel (%p2692) target = $region104
                $region101: #{unfolded_cadzow_up.1} parent=96 // loop_body
                  %v2698 = vld [vmem:[%s2696] sm:$0xff]
                  %2699 = vst [vmem:[%s2697] sm:$0xff] %v2698
                  %v2700 = vld [vmem:[%s2696 + $0x8] sm:$0xff]
                  %2701 = vst [vmem:[%s2697 + $0x20] sm:$0xff] %v2700
                  %v2702 = vld [vmem:[%s2696 + $0x10] sm:$0xff]
                  %2703 = vst [vmem:[%s2697 + $0x40] sm:$0xff] %v2702
                  %v2704 = vld [vmem:[%s2696 + $0x18] sm:$0xff]
                  %2705 = vst [vmem:[%s2697 + $0x60] sm:$0xff] %v2704
                $region102: #{unfolded_cadzow_up.1} parent=96 // loop_footer
                  %s2695 = sadd.s32 1, %s2691
                $region103: #{unfolded_cadzow_up.1} parent=96 // loop_footer_branch
                  %2690 = sbr.rel target = $region99
                $region104: #{unfolded_cadzow_up.1} parent=96 // loop_exit
                  _
              $region97: #{unfolded_cadzow_up.1} parent=81 // pred_fallthru
                _
              // Predicated region
              $region105: #{unfolded_cadzow_up.1} parent=81 // pred_check
                _
              $region106: #{unfolded_cadzow_up.1} parent=81 // pred_check_branch
                %2707 = sbr.rel target = $region108
              $region107: #{unfolded_cadzow_up.1} parent=81 // pred_region
                _
              $region108: #{unfolded_cadzow_up.1} parent=81 // pred_fallthru
                _
            $region82: #{unfolded_cadzow_up.1} parent=77 // pred_fallthru
              _
            // Predicated region
            $region83: #{unfolded_cadzow_up.1} parent=77 // pred_check
              _
            $region84: #{unfolded_cadzow_up.1} parent=77 // pred_check_branch
              %2669 = sbr.rel target = $region86
            $region85: #{unfolded_cadzow_up.1} parent=77 // pred_region
              %s2671 = ssub.s32 256, 1
              loop: start=0, step=1, limit=1
              $region87: #{unfolded_cadzow_up.1} parent=85 // loop_pre_header
                _
              $region88: #{unfolded_cadzow_up.1} parent=85 // loop_header
                %s2673 = sphi 0, %s2677
                %p2674 = scmp.ge.s32.totalorder %s2673, 1
                %s2678 = sphi %s2654, %s2654
                %s2679 = sphi %s2663, %s2663
              $region89: #{unfolded_cadzow_up.1} parent=85 // loop_header_branch
                %2676 = sbr.rel (%p2674) target = $region93
              $region90: #{unfolded_cadzow_up.1} parent=85 // loop_body
                %v2680 = vld [vmem:[%s2678] sm:%s2671]
                %2681 = vst [vmem:[%s2679] sm:%s2671] %v2680
                %v2682 = vld [vmem:[%s2678 + $0x8] sm:%s2671]
                %2683 = vst [vmem:[%s2679 + $0x20] sm:%s2671] %v2682
                %v2684 = vld [vmem:[%s2678 + $0x10] sm:%s2671]
                %2685 = vst [vmem:[%s2679 + $0x40] sm:%s2671] %v2684
                %v2686 = vld [vmem:[%s2678 + $0x18] sm:%s2671]
                %2687 = vst [vmem:[%s2679 + $0x60] sm:%s2671] %v2686
              $region91: #{unfolded_cadzow_up.1} parent=85 // loop_footer
                %s2677 = sadd.s32 1, %s2673
              $region92: #{unfolded_cadzow_up.1} parent=85 // loop_footer_branch
                %2672 = sbr.rel target = $region88
              $region93: #{unfolded_cadzow_up.1} parent=85 // loop_exit
                _
            $region86: #{unfolded_cadzow_up.1} parent=77 // pred_fallthru
              _
          $region78: #{unfolded_cadzow_up.1} parent=73 // pred_fallthru
            _
          %2708 = vnop
        $region74: #{unfolded_cadzow_up.1} parent=65 // pred_fallthru
          _
        // Predicated region
        $region109: #{unfolded_cadzow_up.1} parent=65 // pred_check
          %p2709 = pneg %p140
        $region110: #{unfolded_cadzow_up.1} parent=65 // pred_check_branch
          %2711 = sbr.rel (%p2709) target = $region112
        $region111: #{unfolded_cadzow_up.1} parent=65 // pred_region
          %s2712 = smul.addr %s28, 8
          %s2713 = scalar_lea.vmem %s6, %s2712
          // Predicated region
          $region113: #{unfolded_cadzow_up.1} parent=111 // pred_check
            _
          $region114: #{unfolded_cadzow_up.1} parent=111 // pred_check_branch
            %2715 = sbr.rel (0) target = $region116
          $region115: #{unfolded_cadzow_up.1} parent=111 // pred_region
            // Predicated region
            $region117: #{unfolded_cadzow_up.1} parent=115 // pred_check
              _
            $region118: #{unfolded_cadzow_up.1} parent=115 // pred_check_branch
              %2717 = sbr.rel (0) target = $region120
            $region119: #{unfolded_cadzow_up.1} parent=115 // pred_region
              // Predicated region
              $region132: #{unfolded_cadzow_up.1} parent=119 // pred_check
                _
              $region133: #{unfolded_cadzow_up.1} parent=119 // pred_check_branch
                %2739 = sbr.rel (0) target = $region135
              $region134: #{unfolded_cadzow_up.1} parent=119 // pred_region
                loop: start=0, step=1, limit=1
                $region136: #{unfolded_cadzow_up.1} parent=134 // loop_pre_header
                  _
                $region137: #{unfolded_cadzow_up.1} parent=134 // loop_header
                  %s2741 = sphi 0, %s2745
                  %p2742 = scmp.ge.s32.totalorder %s2741, 1
                  %s2746 = sphi %s2658, %s2658
                  %s2747 = sphi %s2713, %s2713
                $region138: #{unfolded_cadzow_up.1} parent=134 // loop_header_branch
                  %2744 = sbr.rel (%p2742) target = $region142
                $region139: #{unfolded_cadzow_up.1} parent=134 // loop_body
                  %v2748 = vld [vmem:[%s2746] sm:$0xff]
                  %2749 = vst [vmem:[%s2747] sm:$0xff] %v2748
                  %v2750 = vld [vmem:[%s2746 + $0x8] sm:$0xff]
                  %2751 = vst [vmem:[%s2747 + $0x20] sm:$0xff] %v2750
                  %v2752 = vld [vmem:[%s2746 + $0x10] sm:$0xff]
                  %2753 = vst [vmem:[%s2747 + $0x40] sm:$0xff] %v2752
                  %v2754 = vld [vmem:[%s2746 + $0x18] sm:$0xff]
                  %2755 = vst [vmem:[%s2747 + $0x60] sm:$0xff] %v2754
                $region140: #{unfolded_cadzow_up.1} parent=134 // loop_footer
                  %s2745 = sadd.s32 1, %s2741
                $region141: #{unfolded_cadzow_up.1} parent=134 // loop_footer_branch
                  %2740 = sbr.rel target = $region137
                $region142: #{unfolded_cadzow_up.1} parent=134 // loop_exit
                  _
              $region135: #{unfolded_cadzow_up.1} parent=119 // pred_fallthru
                _
              // Predicated region
              $region143: #{unfolded_cadzow_up.1} parent=119 // pred_check
                _
              $region144: #{unfolded_cadzow_up.1} parent=119 // pred_check_branch
                %2757 = sbr.rel target = $region146
              $region145: #{unfolded_cadzow_up.1} parent=119 // pred_region
                _
              $region146: #{unfolded_cadzow_up.1} parent=119 // pred_fallthru
                _
            $region120: #{unfolded_cadzow_up.1} parent=115 // pred_fallthru
              _
            // Predicated region
            $region121: #{unfolded_cadzow_up.1} parent=115 // pred_check
              _
            $region122: #{unfolded_cadzow_up.1} parent=115 // pred_check_branch
              %2719 = sbr.rel target = $region124
            $region123: #{unfolded_cadzow_up.1} parent=115 // pred_region
              %s2721 = ssub.s32 256, 1
              loop: start=0, step=1, limit=1
              $region125: #{unfolded_cadzow_up.1} parent=123 // loop_pre_header
                _
              $region126: #{unfolded_cadzow_up.1} parent=123 // loop_header
                %s2723 = sphi 0, %s2727
                %p2724 = scmp.ge.s32.totalorder %s2723, 1
                %s2728 = sphi %s2658, %s2658
                %s2729 = sphi %s2713, %s2713
              $region127: #{unfolded_cadzow_up.1} parent=123 // loop_header_branch
                %2726 = sbr.rel (%p2724) target = $region131
              $region128: #{unfolded_cadzow_up.1} parent=123 // loop_body
                %v2730 = vld [vmem:[%s2728] sm:%s2721]
                %2731 = vst [vmem:[%s2729] sm:%s2721] %v2730
                %v2732 = vld [vmem:[%s2728 + $0x8] sm:%s2721]
                %2733 = vst [vmem:[%s2729 + $0x20] sm:%s2721] %v2732
                %v2734 = vld [vmem:[%s2728 + $0x10] sm:%s2721]
                %2735 = vst [vmem:[%s2729 + $0x40] sm:%s2721] %v2734
                %v2736 = vld [vmem:[%s2728 + $0x18] sm:%s2721]
                %2737 = vst [vmem:[%s2729 + $0x60] sm:%s2721] %v2736
              $region129: #{unfolded_cadzow_up.1} parent=123 // loop_footer
                %s2727 = sadd.s32 1, %s2723
              $region130: #{unfolded_cadzow_up.1} parent=123 // loop_footer_branch
                %2722 = sbr.rel target = $region126
              $region131: #{unfolded_cadzow_up.1} parent=123 // loop_exit
                _
            $region124: #{unfolded_cadzow_up.1} parent=115 // pred_fallthru
              _
          $region116: #{unfolded_cadzow_up.1} parent=111 // pred_fallthru
            _
          %2758 = vnop
        $region112: #{unfolded_cadzow_up.1} parent=65 // pred_fallthru
          _
      $region66: #{unfolded_cadzow_up.1} parent=5 // pred_fallthru
        _
      %p2759 = scmp.le.s32.totalorder 2, %s23
      // Predicated region
      $region147: #{unfolded_cadzow_up.1} parent=5 // pred_check
        %p2760 = pneg %p2759
      $region148: #{unfolded_cadzow_up.1} parent=5 // pred_check_branch
        %2762 = sbr.rel (%p2760) target = $region150
      $region149: #{unfolded_cadzow_up.1} parent=5 // pred_region
        %s2763 = ssub.s32 %s23, 2
        // Predicated region
        $region151: #{unfolded_cadzow_up.1} parent=149 // pred_check
          %p2764 = pneg %p120
        $region152: #{unfolded_cadzow_up.1} parent=149 // pred_check_branch
          %2766 = sbr.rel (%p2764) target = $region154
        $region153: #{unfolded_cadzow_up.1} parent=149 // pred_region
          %s2767 = sand.u32 %s105, 1
          %s2768 = sand.u32 %s105, 1
          %s2769 = smul.addr %s2768, 32
          %s2770 = scalar_lea.vmem [#allocation6], %s2769
        $region154: #{unfolded_cadzow_up.1} parent=149 // pred_fallthru
          _
        // Predicated region
        $region155: #{unfolded_cadzow_up.1} parent=149 // pred_check
          %p2771 = pneg %p146
        $region156: #{unfolded_cadzow_up.1} parent=149 // pred_check_branch
          %2773 = sbr.rel (%p2771) target = $region158
        $region157: #{unfolded_cadzow_up.1} parent=149 // pred_region
          %s2774 = sand.u32 %s131, 1
          %s2775 = sand.u32 %s131, 1
          %s2776 = smul.addr %s2775, 32
          %s2777 = scalar_lea.vmem [#allocation7], %s2776
        $region158: #{unfolded_cadzow_up.1} parent=149 // pred_fallthru
          _
      $region150: #{unfolded_cadzow_up.1} parent=5 // pred_fallthru
        _
    $region6: #{unfolded_cadzow_up.1} parent=1 // loop_footer
      %s27 = sadd.s32 1, %s23
    $region7: #{unfolded_cadzow_up.1} parent=1 // loop_footer_branch
      %22 = sbr.rel target = $region3
    $region8: #{unfolded_cadzow_up.1} parent=1 // loop_exit
      _

</llo_original>
